<compile_context>
chip_gen: v6e
topology: v6e:2x2x1
jax: 0.10.0
libtpu: 0.0.40
codegen_flags: <defaults>
</compile_context>

<pallas_src>
import jax
import jax.numpy as jnp
from jax.experimental import pallas as pl
from jax.experimental.pallas import tpu as pltpu


def _round_up(x, m):
    return ((x + m - 1) // m) * m


def _ae_kernel(x_ref, w1_ref, b1_ref, w2_ref, b2_ref,
               w3_ref, b3_ref, w4_ref, b4_ref, o_ref):
    # Hot path: 4 bf16 MXU matmuls (f32 accumulation) + VPU bias/ReLU + EUP
    # sigmoid, fused per (TM, D) batch tile.  Weights are VMEM-resident across
    # the whole batch grid.
    x = x_ref[...]                                              # (TM, D) bf16

    # ---- encoder ----
    h1 = jnp.dot(x, w1_ref[...], preferred_element_type=jnp.float32) + b1_ref[...]
    h1 = jnp.maximum(h1, 0.0)                                   # ReLU (f32)
    z = jnp.dot(h1.astype(jnp.bfloat16), w2_ref[...],
                preferred_element_type=jnp.float32) + b2_ref[...]

    # ---- decoder ----
    h2 = jnp.dot(z.astype(jnp.bfloat16), w3_ref[...],
                 preferred_element_type=jnp.float32) + b3_ref[...]
    h2 = jnp.maximum(h2, 0.0)                                   # ReLU (f32)
    y = jnp.dot(h2.astype(jnp.bfloat16), w4_ref[...],
                preferred_element_type=jnp.float32) + b4_ref[...]
    o_ref[...] = jax.nn.sigmoid(y).astype(o_ref.dtype)          # Sigmoid (f32)


def autoencoder_forward(x_nchw, params, *, tm_max=256, lane=128):
    """x_nchw: (B, C, H, W) float32.  Returns reconstruction of same shape."""
    B, C, H, W = x_nchw.shape
    D = C * H * W
    w1, b1, w2, b2, w3, b3, w4, b4 = params
    HID = w1.shape[1]
    LAT = w2.shape[1]

    # ---- MXU / lane alignment: zero-pad hidden & latent dims to 128 lanes.
    # Padded z-columns are 0 (zero w2 cols + zero b2) and padded w3 rows are 0,
    # so the forward math is unchanged.
    HIDp = _round_up(HID, lane)
    LATp = _round_up(LAT, lane)

    def pad2(a, rows, cols):
        return jnp.pad(a, ((0, rows - a.shape[0]), (0, cols - a.shape[1])))

    w1p = pad2(w1, D, HIDp).astype(jnp.bfloat16)
    b1p = pad2(b1, 1, HIDp)
    w2p = pad2(w2, HIDp, LATp).astype(jnp.bfloat16)
    b2p = pad2(b2, 1, LATp)
    w3p = pad2(w3, LATp, HIDp).astype(jnp.bfloat16)
    b3p = pad2(b3, 1, HIDp)
    w4p = pad2(w4, HIDp, D).astype(jnp.bfloat16)
    b4p = pad2(b4, 1, D)

    # ---- batch tiling: TM multiple of 8 sublanes, capped for v7x's smaller
    # VMEM.  Pad the batch so the grid divides evenly, slice result back.
    tm = min(tm_max, _round_up(B, 8))
    Bp = _round_up(B, tm)
    x2d = x_nchw.reshape(B, D).astype(jnp.bfloat16)   # flatten like torch .view(B, -1)
    if Bp != B:
        x2d = jnp.pad(x2d, ((0, Bp - B), (0, 0)))
    nb = Bp // tm

    flops = 2 * Bp * (D * HIDp + HIDp * LATp + LATp * HIDp + HIDp * D)
    bytes_accessed = (
        int(x2d.size) * 2 + Bp * D * 4                                   # in/out
        + sum(int(w.size) * 2 for w in (w1p, w2p, w3p, w4p))             # bf16 weights
        + sum(int(b.size) * 4 for b in (b1p, b2p, b3p, b4p)))            # f32 biases

    x_spec = pl.BlockSpec((tm, D), lambda i: (i, 0))
    o_spec = pl.BlockSpec((tm, D), lambda i: (i, 0))

    def resident(a):
        # Whole-array block, same block index every grid step -> DMA'd once.
        return pl.BlockSpec(a.shape, lambda i: (0, 0))

    out2d = pl.pallas_call(
        _ae_kernel,
        out_shape=jax.ShapeDtypeStruct((Bp, D), jnp.float32),
        grid=(nb,),
        in_specs=[x_spec,
                  resident(w1p), resident(b1p), resident(w2p), resident(b2p),
                  resident(w3p), resident(b3p), resident(w4p), resident(b4p)],
        out_specs=o_spec,
        compiler_params=pltpu.CompilerParams(
            dimension_semantics=("parallel",),
            vmem_limit_bytes=64 << 20),
        cost_estimate=pl.CostEstimate(
            flops=flops, transcendentals=Bp * D, bytes_accessed=bytes_accessed),
    )(x2d, w1p, b1p, w2p, b2p, w3p, b3p, w4p, b4p)

    return out2d[:B].reshape(B, C, H, W)


def init_params(key, d_in, hidden, latent):
    """Deterministic parameter init (shapes match the MLP AE above)."""
    ks = jax.random.split(key, 8)

    def lin(kw, fan_in, fan_out):
        bound = 1.0 / jnp.sqrt(float(fan_in))
        return jax.random.uniform(kw, (fan_in, fan_out), jnp.float32, -bound, bound)

    w1 = lin(ks[0], d_in, hidden)
    b1 = jax.random.uniform(ks[1], (1, hidden), jnp.float32, -1.0, 1.0) * 0.01
    w2 = lin(ks[2], hidden, latent)
    b2 = jax.random.uniform(ks[3], (1, latent), jnp.float32, -1.0, 1.0) * 0.01
    w3 = lin(ks[4], latent, hidden)
    b3 = jax.random.uniform(ks[5], (1, hidden), jnp.float32, -1.0, 1.0) * 0.01
    w4 = lin(ks[6], hidden, d_in)
    b4 = jax.random.uniform(ks[7], (1, d_in), jnp.float32, -1.0, 1.0) * 0.01
    return (w1, b1, w2, b2, w3, b3, w4, b4)


def _ref_forward(x_nchw, params):
    """Pure-JAX reference using the same bf16-matmul / f32-accumulate numerics."""
    B = x_nchw.shape[0]
    bf, f32 = jnp.bfloat16, jnp.float32
    x = x_nchw.reshape(B, -1).astype(bf)
    w1, b1, w2, b2, w3, b3, w4, b4 = params

    def mm(a, w):
        return jnp.dot(a.astype(bf), w.astype(bf), preferred_element_type=f32)

    h1 = jnp.maximum(mm(x, w1) + b1, 0.0)
    z = mm(h1, w2) + b2
    h2 = jnp.maximum(mm(z, w3) + b3, 0.0)
    y = jax.nn.sigmoid(mm(h2, w4) + b4)
    return y.reshape(x_nchw.shape)


if __name__ == "__main__":
    B, C, H, W = 2, 4, 16, 16          # small NCHW input
    D = C * H * W                       # 1024 flattened features
    HIDDEN, LATENT = 128, 32

    key = jax.random.PRNGKey(0)
    k_x, k_p = jax.random.split(key)
    x = jax.random.normal(k_x, (B, C, H, W), jnp.float32)
    params = init_params(k_p, D, HIDDEN, LATENT)

    out = autoencoder_forward(x, params)
    out = jax.block_until_ready(out)

    ref = _ref_forward(x, params)
    assert out.shape == (B, C, H, W)
    # bf16 matmul path on both sides; sigmoid output in [0, 1] -> abs tolerance.
    assert jnp.allclose(out, ref, atol=2e-2, rtol=0.0), float(jnp.max(jnp.abs(out - ref)))

    print("KERNEL_OK")
</pallas_src>

<mosaic_0001>
module attributes {stable_mosaic.version = 11 : i64} {
  func.func @_ae_kernel(%arg0: i32, %arg1: memref<8x1024xbf16, #tpu.memory_space<vmem>>, %arg2: memref<1024x128xbf16, #tpu.memory_space<vmem>>, %arg3: memref<1x128xf32, #tpu.memory_space<vmem>>, %arg4: memref<128x128xbf16, #tpu.memory_space<vmem>>, %arg5: memref<1x128xf32, #tpu.memory_space<vmem>>, %arg6: memref<128x128xbf16, #tpu.memory_space<vmem>>, %arg7: memref<1x128xf32, #tpu.memory_space<vmem>>, %arg8: memref<128x1024xbf16, #tpu.memory_space<vmem>>, %arg9: memref<1x1024xf32, #tpu.memory_space<vmem>>, %arg10: memref<8x1024xf32, #tpu.memory_space<vmem>>) attributes {dimension_semantics = [#tpu.dimension_semantics<parallel>], iteration_bounds = array<i64: 1>, scalar_prefetch = 0 : i64, scratch_operands = 0 : i64, tpu.core_type = #tpu.core_type<tc>, window_params = [{transform_indices = @transform_0, window_bounds = array<i64: 8, 1024>}, {pipeline_mode = #tpu.pipeline_mode<synchronous>, transform_indices = @transform_1, window_bounds = array<i64: 1024, 128>}, {pipeline_mode = #tpu.pipeline_mode<synchronous>, transform_indices = @transform_2, window_bounds = array<i64: 1, 128>}, {pipeline_mode = #tpu.pipeline_mode<synchronous>, transform_indices = @transform_3, window_bounds = array<i64: 128, 128>}, {pipeline_mode = #tpu.pipeline_mode<synchronous>, transform_indices = @transform_4, window_bounds = array<i64: 1, 128>}, {pipeline_mode = #tpu.pipeline_mode<synchronous>, transform_indices = @transform_5, window_bounds = array<i64: 128, 128>}, {pipeline_mode = #tpu.pipeline_mode<synchronous>, transform_indices = @transform_6, window_bounds = array<i64: 1, 128>}, {pipeline_mode = #tpu.pipeline_mode<synchronous>, transform_indices = @transform_7, window_bounds = array<i64: 128, 1024>}, {pipeline_mode = #tpu.pipeline_mode<synchronous>, transform_indices = @transform_8, window_bounds = array<i64: 1, 1024>}, {transform_indices = @transform_9, window_bounds = array<i64: 8, 1024>}]} {
    %c0 = arith.constant 0 : index
    %c0_0 = arith.constant 0 : index
    %0 = vector.load %arg1[%c0, %c0_0] : memref<8x1024xbf16, #tpu.memory_space<vmem>>, vector<8x1024xbf16>
    %c0_1 = arith.constant 0 : index
    %c0_2 = arith.constant 0 : index
    %1 = vector.load %arg2[%c0_1, %c0_2] : memref<1024x128xbf16, #tpu.memory_space<vmem>>, vector<1024x128xbf16>
    %cst = arith.constant dense<0.000000e+00> : vector<8x128xf32>
    %2 = tpu.matmul %0, %1, %cst {dimension_numbers = #tpu.dot_dimension_numbers<[1], [0], [0], [1], [0, 0, 1, 1], [], []>} : vector<8x1024xbf16>, vector<1024x128xbf16>, vector<8x128xf32> -> vector<8x128xf32>
    %c0_3 = arith.constant 0 : index
    %c0_4 = arith.constant 0 : index
    %3 = vector.load %arg3[%c0_3, %c0_4] : memref<1x128xf32, #tpu.memory_space<vmem>>, vector<1x128xf32>
    %4 = vector.broadcast %3 : vector<1x128xf32> to vector<8x128xf32>
    %5 = arith.addf %2, %4 : vector<8x128xf32>
    %cst_5 = arith.constant 0.000000e+00 : f32
    %6 = vector.broadcast %cst_5 : f32 to vector<8x128xf32>
    %7 = arith.maximumf %5, %6 : vector<8x128xf32>
    %8 = arith.truncf %7 : vector<8x128xf32> to vector<8x128xbf16>
    %c0_6 = arith.constant 0 : index
    %c0_7 = arith.constant 0 : index
    %9 = vector.load %arg4[%c0_6, %c0_7] : memref<128x128xbf16, #tpu.memory_space<vmem>>, vector<128x128xbf16>
    %cst_8 = arith.constant dense<0.000000e+00> : vector<8x128xf32>
    %10 = tpu.matmul %8, %9, %cst_8 {dimension_numbers = #tpu.dot_dimension_numbers<[1], [0], [0], [1], [0, 0, 1, 1], [], []>} : vector<8x128xbf16>, vector<128x128xbf16>, vector<8x128xf32> -> vector<8x128xf32>
    %c0_9 = arith.constant 0 : index
    %c0_10 = arith.constant 0 : index
    %11 = vector.load %arg5[%c0_9, %c0_10] : memref<1x128xf32, #tpu.memory_space<vmem>>, vector<1x128xf32>
    %12 = vector.broadcast %11 : vector<1x128xf32> to vector<8x128xf32>
    %13 = arith.addf %10, %12 : vector<8x128xf32>
    %14 = arith.truncf %13 : vector<8x128xf32> to vector<8x128xbf16>
    %c0_11 = arith.constant 0 : index
    %c0_12 = arith.constant 0 : index
    %15 = vector.load %arg6[%c0_11, %c0_12] : memref<128x128xbf16, #tpu.memory_space<vmem>>, vector<128x128xbf16>
    %cst_13 = arith.constant dense<0.000000e+00> : vector<8x128xf32>
    %16 = tpu.matmul %14, %15, %cst_13 {dimension_numbers = #tpu.dot_dimension_numbers<[1], [0], [0], [1], [0, 0, 1, 1], [], []>} : vector<8x128xbf16>, vector<128x128xbf16>, vector<8x128xf32> -> vector<8x128xf32>
    %c0_14 = arith.constant 0 : index
    %c0_15 = arith.constant 0 : index
    %17 = vector.load %arg7[%c0_14, %c0_15] : memref<1x128xf32, #tpu.memory_space<vmem>>, vector<1x128xf32>
    %18 = vector.broadcast %17 : vector<1x128xf32> to vector<8x128xf32>
    %19 = arith.addf %16, %18 : vector<8x128xf32>
    %cst_16 = arith.constant 0.000000e+00 : f32
    %20 = vector.broadcast %cst_16 : f32 to vector<8x128xf32>
    %21 = arith.maximumf %19, %20 : vector<8x128xf32>
    %22 = arith.truncf %21 : vector<8x128xf32> to vector<8x128xbf16>
    %c0_17 = arith.constant 0 : index
    %c0_18 = arith.constant 0 : index
    %23 = vector.load %arg8[%c0_17, %c0_18] : memref<128x1024xbf16, #tpu.memory_space<vmem>>, vector<128x1024xbf16>
    %cst_19 = arith.constant dense<0.000000e+00> : vector<8x1024xf32>
    %24 = tpu.matmul %22, %23, %cst_19 {dimension_numbers = #tpu.dot_dimension_numbers<[1], [0], [0], [1], [0, 0, 1, 1], [], []>} : vector<8x128xbf16>, vector<128x1024xbf16>, vector<8x1024xf32> -> vector<8x1024xf32>
    %c0_20 = arith.constant 0 : index
    %c0_21 = arith.constant 0 : index
    %25 = vector.load %arg9[%c0_20, %c0_21] : memref<1x1024xf32, #tpu.memory_space<vmem>>, vector<1x1024xf32>
    %26 = vector.broadcast %25 : vector<1x1024xf32> to vector<8x1024xf32>
    %27 = arith.addf %24, %26 : vector<8x1024xf32>
    %28 = arith.negf %27 : vector<8x1024xf32>
    %29 = math.exp %28 : vector<8x1024xf32>
    %cst_22 = arith.constant 1.000000e+00 : f32
    %30 = vector.broadcast %cst_22 : f32 to vector<8x1024xf32>
    %31 = arith.addf %30, %29 : vector<8x1024xf32>
    %32 = arith.divf %30, %31 : vector<8x1024xf32>
    %c0_23 = arith.constant 0 : index
    %c0_24 = arith.constant 0 : index
    %33 = vector.load %arg10[%c0_23, %c0_24] : memref<8x1024xf32, #tpu.memory_space<vmem>>, vector<8x1024xf32>
    tpu.vector_store %arg10[%c0_23, %c0_24], %32 {strides = array<i32>} : memref<8x1024xf32, #tpu.memory_space<vmem>>, vector<8x1024xf32>,
    return
  }
  func.func @transform_0(%arg0: i32) -> (i32, i32) {
    %c0_i32 = arith.constant 0 : i32
    %c0_i32_0 = arith.constant 0 : i32
    return %arg0, %c0_i32 : i32, i32
  }
  func.func @transform_1(%arg0: i32) -> (i32, i32) {
    %c0_i32 = arith.constant 0 : i32
    %c0_i32_0 = arith.constant 0 : i32
    %c0_i32_1 = arith.constant 0 : i32
    return %c0_i32, %c0_i32_0 : i32, i32
  }
  func.func @transform_2(%arg0: i32) -> (i32, i32) {
    %c0_i32 = arith.constant 0 : i32
    %c0_i32_0 = arith.constant 0 : i32
    %c0_i32_1 = arith.constant 0 : i32
    return %c0_i32, %c0_i32_0 : i32, i32
  }
  func.func @transform_3(%arg0: i32) -> (i32, i32) {
    %c0_i32 = arith.constant 0 : i32
    %c0_i32_0 = arith.constant 0 : i32
    %c0_i32_1 = arith.constant 0 : i32
    return %c0_i32, %c0_i32_0 : i32, i32
  }
  func.func @transform_4(%arg0: i32) -> (i32, i32) {
    %c0_i32 = arith.constant 0 : i32
    %c0_i32_0 = arith.constant 0 : i32
    %c0_i32_1 = arith.constant 0 : i32
    return %c0_i32, %c0_i32_0 : i32, i32
  }
  func.func @transform_5(%arg0: i32) -> (i32, i32) {
    %c0_i32 = arith.constant 0 : i32
    %c0_i32_0 = arith.constant 0 : i32
    %c0_i32_1 = arith.constant 0 : i32
    return %c0_i32, %c0_i32_0 : i32, i32
  }
  func.func @transform_6(%arg0: i32) -> (i32, i32) {
    %c0_i32 = arith.constant 0 : i32
    %c0_i32_0 = arith.constant 0 : i32
    %c0_i32_1 = arith.constant 0 : i32
    return %c0_i32, %c0_i32_0 : i32, i32
  }
  func.func @transform_7(%arg0: i32) -> (i32, i32) {
    %c0_i32 = arith.constant 0 : i32
    %c0_i32_0 = arith.constant 0 : i32
    %c0_i32_1 = arith.constant 0 : i32
    return %c0_i32, %c0_i32_0 : i32, i32
  }
  func.func @transform_8(%arg0: i32) -> (i32, i32) {
    %c0_i32 = arith.constant 0 : i32
    %c0_i32_0 = arith.constant 0 : i32
    %c0_i32_1 = arith.constant 0 : i32
    return %c0_i32, %c0_i32_0 : i32, i32
  }
  func.func @transform_9(%arg0: i32) -> (i32, i32) {
    %c0_i32 = arith.constant 0 : i32
    %c0_i32_0 = arith.constant 0 : i32
    return %arg0, %c0_i32 : i32, i32
  }
}

</mosaic_0001>

<llo_original>
// kernel: tpu_custom_call.1
$region0: #{tpu_custom_call.1}
  #allocation0 [shape = 'u32[]', space=smem, size = 0x4, offset = 0x4, fixed_abs, tag = 'smem constant byte address 0x4 - core index']
  #allocation1 [shape = 'u32[144,128]{1,0:T(1,128)}', space=vmem, size = 0x12000, scoped, tag = 'internal scratch']
  %s0 = inlined_call_operand.hbm [shape: bf16[8,1024], index: 0, kind: input, shape index: {}]
  %s1 = inlined_call_operand.hbm [shape: bf16[1024,128], index: 1, kind: input, shape index: {}]
  %s2 = inlined_call_operand.vmem [shape: f32[1,128], index: 2, kind: input, shape index: {}]
  %s3 = inlined_call_operand.hbm [shape: bf16[128,128], index: 3, kind: input, shape index: {}]
  %s4 = inlined_call_operand.vmem [shape: f32[1,128], index: 4, kind: input, shape index: {}]
  %s5 = inlined_call_operand.hbm [shape: bf16[128,128], index: 5, kind: input, shape index: {}]
  %s6 = inlined_call_operand.vmem [shape: f32[1,128], index: 6, kind: input, shape index: {}]
  %s7 = inlined_call_operand.hbm [shape: bf16[128,1024], index: 7, kind: input, shape index: {}]
  %s8 = inlined_call_operand.vmem [shape: f32[1,1024], index: 8, kind: input, shape index: {}]
  %s9 = inlined_call_operand.hbm [shape: f32[8,1024], index: 9, kind: output, shape index: {}]
  %s10 = sld [smem:[#allocation0]]
  $region66: #{tpu_custom_call.1} parent=0
    _
  %s12 = ssub.s32 1, %s10
  %s13 = scalar_select 0, %s12, %s10
  $region1: #{tpu_custom_call.1} parent=0
    #allocation2 [shape = 'u8[16384]{0}', space=vmem, size = 0x4000, scoped, tag = 'input window, operand 0, single buffered']
    #allocation3 [shape = 's32[1]{0}', space=sflag, size = 0x4, scoped, tag = 'scoped memory for tpu_custom_call.1']
    #allocation4 [shape = 's32[1]{0}', space=sflag, size = 0x4, scoped, tag = 'scoped memory for tpu_custom_call.1']
    #allocation5 [shape = 'u8[262144]{0}', space=vmem, size = 0x40000, scoped, tag = 'input window, operand 1, single buffered']
    #allocation6 [shape = 's32[1]{0}', space=sflag, size = 0x4, scoped, tag = 'scoped memory for tpu_custom_call.1']
    #allocation7 [shape = 'u8[32768]{0}', space=vmem, size = 0x8000, scoped, tag = 'input window, operand 3, single buffered']
    #allocation8 [shape = 'u8[32768]{0}', space=vmem, size = 0x8000, scoped, tag = 'input window, operand 5, single buffered']
    #allocation9 [shape = 's32[1]{0}', space=sflag, size = 0x4, scoped, tag = 'scoped memory for tpu_custom_call.1']
    #allocation10 [shape = 'u8[262144]{0}', space=vmem, size = 0x40000, scoped, tag = 'input window, operand 7, single buffered']
    #allocation11 [shape = 'u8[32768]{0}', space=vmem, size = 0x8000, scoped, tag = 'output window, operand 0, single buffered']
    %14 = vsyncpa [#allocation3], 0
    %15 = vsyncpa [#allocation6], 0
    %16 = vsyncpa [#allocation9], 0
    %17 = vsyncpa [#allocation4], 0
    // Predicated region
    $region2: #{tpu_custom_call.1} parent=1 // pred_check
      _
    $region3: #{tpu_custom_call.1} parent=1 // pred_check_branch
      %19 = sbr.rel (0) target = $region5
    $region4: #{tpu_custom_call.1} parent=1 // pred_region
      %s21 = ssub.s32 512, 512
      %22 = vsyncadd [#allocation3], %s21
      %s24 = sshll.u32 [#allocation2], 4
      %s25 = int_to_ptr.vmem [resolvable:$true] %s24
      %27 = dma.hbm_to_vmem [thread:$0]  %s0, 512, %s25, [#allocation3]
    $region5: #{tpu_custom_call.1} parent=1 // pred_fallthru
      _
    // Predicated region
    $region6: #{tpu_custom_call.1} parent=1 // pred_check
      _
    $region7: #{tpu_custom_call.1} parent=1 // pred_check_branch
      %29 = sbr.rel (0) target = $region9
    $region8: #{tpu_custom_call.1} parent=1 // pred_region
      %s31 = ssub.s32 8192, 8192
      %32 = vsyncadd [#allocation6], %s31
      %s33 = sshll.u32 [#allocation5], 4
      %s34 = int_to_ptr.vmem [resolvable:$true] %s33
      %39 = dma.hbm_to_vmem [thread:$0]  %s1, 8192, %s34, [#allocation6], 64, 64, 4
    $region9: #{tpu_custom_call.1} parent=1 // pred_fallthru
      _
    // Predicated region
    $region10: #{tpu_custom_call.1} parent=1 // pred_check
      _
    $region11: #{tpu_custom_call.1} parent=1 // pred_check_branch
      %41 = sbr.rel (0) target = $region13
    $region12: #{tpu_custom_call.1} parent=1 // pred_region
      _
    $region13: #{tpu_custom_call.1} parent=1 // pred_fallthru
      _
    // Predicated region
    $region14: #{tpu_custom_call.1} parent=1 // pred_check
      _
    $region15: #{tpu_custom_call.1} parent=1 // pred_check_branch
      %43 = sbr.rel (0) target = $region17
    $region16: #{tpu_custom_call.1} parent=1 // pred_region
      %s45 = ssub.s32 1024, 1024
      %46 = vsyncadd [#allocation6], %s45
      %s47 = sshll.u32 [#allocation7], 4
      %s48 = int_to_ptr.vmem [resolvable:$true] %s47
      %53 = dma.hbm_to_vmem [thread:$0]  %s3, 1024, %s48, [#allocation6], 64, 64, 4
    $region17: #{tpu_custom_call.1} parent=1 // pred_fallthru
      _
    // Predicated region
    $region18: #{tpu_custom_call.1} parent=1 // pred_check
      _
    $region19: #{tpu_custom_call.1} parent=1 // pred_check_branch
      %55 = sbr.rel (0) target = $region21
    $region20: #{tpu_custom_call.1} parent=1 // pred_region
      _
    $region21: #{tpu_custom_call.1} parent=1 // pred_fallthru
      _
    // Predicated region
    $region22: #{tpu_custom_call.1} parent=1 // pred_check
      _
    $region23: #{tpu_custom_call.1} parent=1 // pred_check_branch
      %57 = sbr.rel (0) target = $region25
    $region24: #{tpu_custom_call.1} parent=1 // pred_region
      %s59 = ssub.s32 1024, 1024
      %60 = vsyncadd [#allocation9], %s59
      %s61 = sshll.u32 [#allocation8], 4
      %s62 = int_to_ptr.vmem [resolvable:$true] %s61
      %67 = dma.hbm_to_vmem [thread:$0]  %s5, 1024, %s62, [#allocation9], 64, 64, 4
    $region25: #{tpu_custom_call.1} parent=1 // pred_fallthru
      _
    // Predicated region
    $region26: #{tpu_custom_call.1} parent=1 // pred_check
      _
    $region27: #{tpu_custom_call.1} parent=1 // pred_check_branch
      %69 = sbr.rel (0) target = $region29
    $region28: #{tpu_custom_call.1} parent=1 // pred_region
      _
    $region29: #{tpu_custom_call.1} parent=1 // pred_fallthru
      _
    // Predicated region
    $region30: #{tpu_custom_call.1} parent=1 // pred_check
      _
    $region31: #{tpu_custom_call.1} parent=1 // pred_check_branch
      %71 = sbr.rel (0) target = $region33
    $region32: #{tpu_custom_call.1} parent=1 // pred_region
      %s73 = ssub.s32 8192, 8192
      %74 = vsyncadd [#allocation9], %s73
      %s75 = sshll.u32 [#allocation10], 4
      %s76 = int_to_ptr.vmem [resolvable:$true] %s75
      %81 = dma.hbm_to_vmem [thread:$0]  %s7, 8192, %s76, [#allocation9], 512, 512, 32
    $region33: #{tpu_custom_call.1} parent=1 // pred_fallthru
      _
    // Predicated region
    $region34: #{tpu_custom_call.1} parent=1 // pred_check
      _
    $region35: #{tpu_custom_call.1} parent=1 // pred_check_branch
      %83 = sbr.rel (0) target = $region37
    $region36: #{tpu_custom_call.1} parent=1 // pred_region
      _
    $region37: #{tpu_custom_call.1} parent=1 // pred_fallthru
      _
    // Predicated region
    $region38: #{tpu_custom_call.1} parent=1 // pred_check
      _
    $region39: #{tpu_custom_call.1} parent=1 // pred_check_branch
      %85 = sbr.rel (0) target = $region41
    $region40: #{tpu_custom_call.1} parent=1 // pred_region
      %86 = dma.done [#allocation3], 512
    $region41: #{tpu_custom_call.1} parent=1 // pred_fallthru
      _
    // Predicated region
    $region42: #{tpu_custom_call.1} parent=1 // pred_check
      _
    $region43: #{tpu_custom_call.1} parent=1 // pred_check_branch
      %88 = sbr.rel (0) target = $region45
    $region44: #{tpu_custom_call.1} parent=1 // pred_region
      %89 = dma.done [#allocation6], 8192
    $region45: #{tpu_custom_call.1} parent=1 // pred_fallthru
      _
    // Predicated region
    $region46: #{tpu_custom_call.1} parent=1 // pred_check
      _
    $region47: #{tpu_custom_call.1} parent=1 // pred_check_branch
      %91 = sbr.rel (0) target = $region49
    $region48: #{tpu_custom_call.1} parent=1 // pred_region
      %92 = dma.done [#allocation6], 1024
    $region49: #{tpu_custom_call.1} parent=1 // pred_fallthru
      _
    // Predicated region
    $region50: #{tpu_custom_call.1} parent=1 // pred_check
      _
    $region51: #{tpu_custom_call.1} parent=1 // pred_check_branch
      %94 = sbr.rel (0) target = $region53
    $region52: #{tpu_custom_call.1} parent=1 // pred_region
      %95 = dma.done [#allocation9], 1024
    $region53: #{tpu_custom_call.1} parent=1 // pred_fallthru
      _
    // Predicated region
    $region54: #{tpu_custom_call.1} parent=1 // pred_check
      _
    $region55: #{tpu_custom_call.1} parent=1 // pred_check_branch
      %97 = sbr.rel (0) target = $region57
    $region56: #{tpu_custom_call.1} parent=1 // pred_region
      %98 = dma.done [#allocation9], 8192
    $region57: #{tpu_custom_call.1} parent=1 // pred_fallthru
      _
    %v100 = vld [vmem:[#allocation2] sm:$0xff]
    %v101 = vld [vmem:[#allocation2 + $0x8] sm:$0xff]
    %v102 = vld [vmem:[#allocation2 + $0x10] sm:$0xff]
    %v103 = vld [vmem:[#allocation2 + $0x18] sm:$0xff]
    %v104 = vld [vmem:[#allocation5] sm:$0xf]
    %v105 = vld [vmem:[#allocation5 + $0x4] sm:$0xf]
    %v106 = vld [vmem:[#allocation5 + $0x8] sm:$0xf]
    %v107 = vld [vmem:[#allocation5 + $0xc] sm:$0xf]
    %v108 = vld [vmem:[#allocation5 + $0x10] sm:$0xf]
    %v109 = vld [vmem:[#allocation5 + $0x14] sm:$0xf]
    %v110 = vld [vmem:[#allocation5 + $0x18] sm:$0xf]
    %v111 = vld [vmem:[#allocation5 + $0x1c] sm:$0xf]
    %v112 = vld [vmem:[#allocation5 + $0x20] sm:$0xf]
    %v113 = vld [vmem:[#allocation5 + $0x24] sm:$0xf]
    %v114 = vld [vmem:[#allocation5 + $0x28] sm:$0xf]
    %v115 = vld [vmem:[#allocation5 + $0x2c] sm:$0xf]
    %v116 = vld [vmem:[#allocation5 + $0x30] sm:$0xf]
    %v117 = vld [vmem:[#allocation5 + $0x34] sm:$0xf]
    %v118 = vld [vmem:[#allocation5 + $0x38] sm:$0xf]
    %v119 = vld [vmem:[#allocation5 + $0x3c] sm:$0xf]
    %v120 = vld [vmem:[#allocation5 + $0x40] sm:$0xf]
    %v121 = vld [vmem:[#allocation5 + $0x44] sm:$0xf]
    %v122 = vld [vmem:[#allocation5 + $0x48] sm:$0xf]
    %v123 = vld [vmem:[#allocation5 + $0x4c] sm:$0xf]
    %v124 = vld [vmem:[#allocation5 + $0x50] sm:$0xf]
    %v125 = vld [vmem:[#allocation5 + $0x54] sm:$0xf]
    %v126 = vld [vmem:[#allocation5 + $0x58] sm:$0xf]
    %v127 = vld [vmem:[#allocation5 + $0x5c] sm:$0xf]
    %v128 = vld [vmem:[#allocation5 + $0x60] sm:$0xf]
    %v129 = vld [vmem:[#allocation5 + $0x64] sm:$0xf]
    %v130 = vld [vmem:[#allocation5 + $0x68] sm:$0xf]
    %v131 = vld [vmem:[#allocation5 + $0x6c] sm:$0xf]
    %v132 = vld [vmem:[#allocation5 + $0x70] sm:$0xf]
    %v133 = vld [vmem:[#allocation5 + $0x74] sm:$0xf]
    %v134 = vld [vmem:[#allocation5 + $0x78] sm:$0xf]
    %v135 = vld [vmem:[#allocation5 + $0x7c] sm:$0xf]
    %v136 = vld [vmem:[#allocation5 + $0x80] sm:$0xf]
    %v137 = vld [vmem:[#allocation5 + $0x84] sm:$0xf]
    %v138 = vld [vmem:[#allocation5 + $0x88] sm:$0xf]
    %v139 = vld [vmem:[#allocation5 + $0x8c] sm:$0xf]
    %v140 = vld [vmem:[#allocation5 + $0x90] sm:$0xf]
    %v141 = vld [vmem:[#allocation5 + $0x94] sm:$0xf]
    %v142 = vld [vmem:[#allocation5 + $0x98] sm:$0xf]
    %v143 = vld [vmem:[#allocation5 + $0x9c] sm:$0xf]
    %v144 = vld [vmem:[#allocation5 + $0xa0] sm:$0xf]
    %v145 = vld [vmem:[#allocation5 + $0xa4] sm:$0xf]
    %v146 = vld [vmem:[#allocation5 + $0xa8] sm:$0xf]
    %v147 = vld [vmem:[#allocation5 + $0xac] sm:$0xf]
    %v148 = vld [vmem:[#allocation5 + $0xb0] sm:$0xf]
    %v149 = vld [vmem:[#allocation5 + $0xb4] sm:$0xf]
    %v150 = vld [vmem:[#allocation5 + $0xb8] sm:$0xf]
    %v151 = vld [vmem:[#allocation5 + $0xbc] sm:$0xf]
    %v152 = vld [vmem:[#allocation5 + $0xc0] sm:$0xf]
    %v153 = vld [vmem:[#allocation5 + $0xc4] sm:$0xf]
    %v154 = vld [vmem:[#allocation5 + $0xc8] sm:$0xf]
    %v155 = vld [vmem:[#allocation5 + $0xcc] sm:$0xf]
    %v156 = vld [vmem:[#allocation5 + $0xd0] sm:$0xf]
    %v157 = vld [vmem:[#allocation5 + $0xd4] sm:$0xf]
    %v158 = vld [vmem:[#allocation5 + $0xd8] sm:$0xf]
    %v159 = vld [vmem:[#allocation5 + $0xdc] sm:$0xf]
    %v160 = vld [vmem:[#allocation5 + $0xe0] sm:$0xf]
    %v161 = vld [vmem:[#allocation5 + $0xe4] sm:$0xf]
    %v162 = vld [vmem:[#allocation5 + $0xe8] sm:$0xf]
    %v163 = vld [vmem:[#allocation5 + $0xec] sm:$0xf]
    %v164 = vld [vmem:[#allocation5 + $0xf0] sm:$0xf]
    %v165 = vld [vmem:[#allocation5 + $0xf4] sm:$0xf]
    %v166 = vld [vmem:[#allocation5 + $0xf8] sm:$0xf]
    %v167 = vld [vmem:[#allocation5 + $0xfc] sm:$0xf]
    %v168 = vld [vmem:[#allocation5 + $0x100] sm:$0xf]
    %v169 = vld [vmem:[#allocation5 + $0x104] sm:$0xf]
    %v170 = vld [vmem:[#allocation5 + $0x108] sm:$0xf]
    %v171 = vld [vmem:[#allocation5 + $0x10c] sm:$0xf]
    %v172 = vld [vmem:[#allocation5 + $0x110] sm:$0xf]
    %v173 = vld [vmem:[#allocation5 + $0x114] sm:$0xf]
    %v174 = vld [vmem:[#allocation5 + $0x118] sm:$0xf]
    %v175 = vld [vmem:[#allocation5 + $0x11c] sm:$0xf]
    %v176 = vld [vmem:[#allocation5 + $0x120] sm:$0xf]
    %v177 = vld [vmem:[#allocation5 + $0x124] sm:$0xf]
    %v178 = vld [vmem:[#allocation5 + $0x128] sm:$0xf]
    %v179 = vld [vmem:[#allocation5 + $0x12c] sm:$0xf]
    %v180 = vld [vmem:[#allocation5 + $0x130] sm:$0xf]
    %v181 = vld [vmem:[#allocation5 + $0x134] sm:$0xf]
    %v182 = vld [vmem:[#allocation5 + $0x138] sm:$0xf]
    %v183 = vld [vmem:[#allocation5 + $0x13c] sm:$0xf]
    %v184 = vld [vmem:[#allocation5 + $0x140] sm:$0xf]
    %v185 = vld [vmem:[#allocation5 + $0x144] sm:$0xf]
    %v186 = vld [vmem:[#allocation5 + $0x148] sm:$0xf]
    %v187 = vld [vmem:[#allocation5 + $0x14c] sm:$0xf]
    %v188 = vld [vmem:[#allocation5 + $0x150] sm:$0xf]
    %v189 = vld [vmem:[#allocation5 + $0x154] sm:$0xf]
    %v190 = vld [vmem:[#allocation5 + $0x158] sm:$0xf]
    %v191 = vld [vmem:[#allocation5 + $0x15c] sm:$0xf]
    %v192 = vld [vmem:[#allocation5 + $0x160] sm:$0xf]
    %v193 = vld [vmem:[#allocation5 + $0x164] sm:$0xf]
    %v194 = vld [vmem:[#allocation5 + $0x168] sm:$0xf]
    %v195 = vld [vmem:[#allocation5 + $0x16c] sm:$0xf]
    %v196 = vld [vmem:[#allocation5 + $0x170] sm:$0xf]
    %v197 = vld [vmem:[#allocation5 + $0x174] sm:$0xf]
    %v198 = vld [vmem:[#allocation5 + $0x178] sm:$0xf]
    %v199 = vld [vmem:[#allocation5 + $0x17c] sm:$0xf]
    %v200 = vld [vmem:[#allocation5 + $0x180] sm:$0xf]
    %v201 = vld [vmem:[#allocation5 + $0x184] sm:$0xf]
    %v202 = vld [vmem:[#allocation5 + $0x188] sm:$0xf]
    %v203 = vld [vmem:[#allocation5 + $0x18c] sm:$0xf]
    %v204 = vld [vmem:[#allocation5 + $0x190] sm:$0xf]
    %v205 = vld [vmem:[#allocation5 + $0x194] sm:$0xf]
    %v206 = vld [vmem:[#allocation5 + $0x198] sm:$0xf]
    %v207 = vld [vmem:[#allocation5 + $0x19c] sm:$0xf]
    %v208 = vld [vmem:[#allocation5 + $0x1a0] sm:$0xf]
    %v209 = vld [vmem:[#allocation5 + $0x1a4] sm:$0xf]
    %v210 = vld [vmem:[#allocation5 + $0x1a8] sm:$0xf]
    %v211 = vld [vmem:[#allocation5 + $0x1ac] sm:$0xf]
    %v212 = vld [vmem:[#allocation5 + $0x1b0] sm:$0xf]
    %v213 = vld [vmem:[#allocation5 + $0x1b4] sm:$0xf]
    %v214 = vld [vmem:[#allocation5 + $0x1b8] sm:$0xf]
    %v215 = vld [vmem:[#allocation5 + $0x1bc] sm:$0xf]
    %v216 = vld [vmem:[#allocation5 + $0x1c0] sm:$0xf]
    %v217 = vld [vmem:[#allocation5 + $0x1c4] sm:$0xf]
    %v218 = vld [vmem:[#allocation5 + $0x1c8] sm:$0xf]
    %v219 = vld [vmem:[#allocation5 + $0x1cc] sm:$0xf]
    %v220 = vld [vmem:[#allocation5 + $0x1d0] sm:$0xf]
    %v221 = vld [vmem:[#allocation5 + $0x1d4] sm:$0xf]
    %v222 = vld [vmem:[#allocation5 + $0x1d8] sm:$0xf]
    %v223 = vld [vmem:[#allocation5 + $0x1dc] sm:$0xf]
    %v224 = vld [vmem:[#allocation5 + $0x1e0] sm:$0xf]
    %v225 = vld [vmem:[#allocation5 + $0x1e4] sm:$0xf]
    %v226 = vld [vmem:[#allocation5 + $0x1e8] sm:$0xf]
    %v227 = vld [vmem:[#allocation5 + $0x1ec] sm:$0xf]
    %v228 = vld [vmem:[#allocation5 + $0x1f0] sm:$0xf]
    %v229 = vld [vmem:[#allocation5 + $0x1f4] sm:$0xf]
    %v230 = vld [vmem:[#allocation5 + $0x1f8] sm:$0xf]
    %v231 = vld [vmem:[#allocation5 + $0x1fc] sm:$0xf]
    %v232 = vld [vmem:[%s2] sm:$0x1]
    %v234 = vlaneseq
    %v235 = vshrl.u32 %v234, 7
    %v236 = vsub.s32 0, %v235
    %v237 = vrot.slane %v232, %v236
    %v243 = vunpack.c.l.b16 %v100
    %v244 = vunpack.c.h.b16 %v100
    %v245 = vunpack.c.l.b16 %v101
    %v246 = vunpack.c.h.b16 %v101
    %v247 = vunpack.c.l.b16 %v102
    %v248 = vunpack.c.h.b16 %v102
    %v249 = vunpack.c.l.b16 %v103
    %v250 = vunpack.c.h.b16 %v103
    %v251 = vpack.c.b16 %v243, %v243
    %v252 = vpack.c.b16 %v244, %v244
    %v253 = vpack.c.b16 %v245, %v245
    %v254 = vpack.c.b16 %v246, %v246
    %v255 = vpack.c.b16 %v247, %v247
    %v256 = vpack.c.b16 %v248, %v248
    %v257 = vpack.c.b16 %v249, %v249
    %v258 = vpack.c.b16 %v250, %v250
    %v395 = vunpack.c.l.b16 %v104
    %v396 = vunpack.c.l.b16 %v105
    %v397 = vunpack.c.l.b16 %v106
    %v398 = vunpack.c.l.b16 %v107
    %v399 = vunpack.c.l.b16 %v108
    %v400 = vunpack.c.l.b16 %v109
    %v401 = vunpack.c.l.b16 %v110
    %v402 = vunpack.c.l.b16 %v111
    %v403 = vunpack.c.l.b16 %v112
    %v404 = vunpack.c.l.b16 %v113
    %v405 = vunpack.c.l.b16 %v114
    %v406 = vunpack.c.l.b16 %v115
    %v407 = vunpack.c.l.b16 %v116
    %v408 = vunpack.c.l.b16 %v117
    %v409 = vunpack.c.l.b16 %v118
    %v410 = vunpack.c.l.b16 %v119
    %v411 = vunpack.c.l.b16 %v120
    %v412 = vunpack.c.l.b16 %v121
    %v413 = vunpack.c.l.b16 %v122
    %v414 = vunpack.c.l.b16 %v123
    %v415 = vunpack.c.l.b16 %v124
    %v416 = vunpack.c.l.b16 %v125
    %v417 = vunpack.c.l.b16 %v126
    %v418 = vunpack.c.l.b16 %v127
    %v419 = vunpack.c.l.b16 %v128
    %v420 = vunpack.c.l.b16 %v129
    %v421 = vunpack.c.l.b16 %v130
    %v422 = vunpack.c.l.b16 %v131
    %v423 = vunpack.c.l.b16 %v132
    %v424 = vunpack.c.l.b16 %v133
    %v425 = vunpack.c.l.b16 %v134
    %v426 = vunpack.c.l.b16 %v135
    %v427 = vunpack.c.l.b16 %v136
    %v428 = vunpack.c.l.b16 %v137
    %v429 = vunpack.c.l.b16 %v138
    %v430 = vunpack.c.l.b16 %v139
    %v431 = vunpack.c.l.b16 %v140
    %v432 = vunpack.c.l.b16 %v141
    %v433 = vunpack.c.l.b16 %v142
    %v434 = vunpack.c.l.b16 %v143
    %v435 = vunpack.c.l.b16 %v144
    %v436 = vunpack.c.l.b16 %v145
    %v437 = vunpack.c.l.b16 %v146
    %v438 = vunpack.c.l.b16 %v147
    %v439 = vunpack.c.l.b16 %v148
    %v440 = vunpack.c.l.b16 %v149
    %v441 = vunpack.c.l.b16 %v150
    %v442 = vunpack.c.l.b16 %v151
    %v443 = vunpack.c.l.b16 %v152
    %v444 = vunpack.c.l.b16 %v153
    %v445 = vunpack.c.l.b16 %v154
    %v446 = vunpack.c.l.b16 %v155
    %v447 = vunpack.c.l.b16 %v156
    %v448 = vunpack.c.l.b16 %v157
    %v449 = vunpack.c.l.b16 %v158
    %v450 = vunpack.c.l.b16 %v159
    %v451 = vunpack.c.l.b16 %v160
    %v452 = vunpack.c.l.b16 %v161
    %v453 = vunpack.c.l.b16 %v162
    %v454 = vunpack.c.l.b16 %v163
    %v455 = vunpack.c.l.b16 %v164
    %v456 = vunpack.c.l.b16 %v165
    %v457 = vunpack.c.l.b16 %v166
    %v458 = vunpack.c.l.b16 %v167
    %v459 = vunpack.c.l.b16 %v168
    %v460 = vunpack.c.l.b16 %v169
    %v461 = vunpack.c.l.b16 %v170
    %v462 = vunpack.c.l.b16 %v171
    %v463 = vunpack.c.l.b16 %v172
    %v464 = vunpack.c.l.b16 %v173
    %v465 = vunpack.c.l.b16 %v174
    %v466 = vunpack.c.l.b16 %v175
    %v467 = vunpack.c.l.b16 %v176
    %v468 = vunpack.c.l.b16 %v177
    %v469 = vunpack.c.l.b16 %v178
    %v470 = vunpack.c.l.b16 %v179
    %v471 = vunpack.c.l.b16 %v180
    %v472 = vunpack.c.l.b16 %v181
    %v473 = vunpack.c.l.b16 %v182
    %v474 = vunpack.c.l.b16 %v183
    %v475 = vunpack.c.l.b16 %v184
    %v476 = vunpack.c.l.b16 %v185
    %v477 = vunpack.c.l.b16 %v186
    %v478 = vunpack.c.l.b16 %v187
    %v479 = vunpack.c.l.b16 %v188
    %v480 = vunpack.c.l.b16 %v189
    %v481 = vunpack.c.l.b16 %v190
    %v482 = vunpack.c.l.b16 %v191
    %v483 = vunpack.c.l.b16 %v192
    %v484 = vunpack.c.l.b16 %v193
    %v485 = vunpack.c.l.b16 %v194
    %v486 = vunpack.c.l.b16 %v195
    %v487 = vunpack.c.l.b16 %v196
    %v488 = vunpack.c.l.b16 %v197
    %v489 = vunpack.c.l.b16 %v198
    %v490 = vunpack.c.l.b16 %v199
    %v491 = vunpack.c.l.b16 %v200
    %v492 = vunpack.c.l.b16 %v201
    %v493 = vunpack.c.l.b16 %v202
    %v494 = vunpack.c.l.b16 %v203
    %v495 = vunpack.c.l.b16 %v204
    %v496 = vunpack.c.l.b16 %v205
    %v497 = vunpack.c.l.b16 %v206
    %v498 = vunpack.c.l.b16 %v207
    %v499 = vunpack.c.l.b16 %v208
    %v500 = vunpack.c.l.b16 %v209
    %v501 = vunpack.c.l.b16 %v210
    %v502 = vunpack.c.l.b16 %v211
    %v503 = vunpack.c.l.b16 %v212
    %v504 = vunpack.c.l.b16 %v213
    %v505 = vunpack.c.l.b16 %v214
    %v506 = vunpack.c.l.b16 %v215
    %v507 = vunpack.c.l.b16 %v216
    %v508 = vunpack.c.l.b16 %v217
    %v509 = vunpack.c.l.b16 %v218
    %v510 = vunpack.c.l.b16 %v219
    %v511 = vunpack.c.l.b16 %v220
    %v512 = vunpack.c.l.b16 %v221
    %v513 = vunpack.c.l.b16 %v222
    %v514 = vunpack.c.l.b16 %v223
    %v515 = vunpack.c.l.b16 %v224
    %v516 = vunpack.c.l.b16 %v225
    %v517 = vunpack.c.l.b16 %v226
    %v518 = vunpack.c.l.b16 %v227
    %v519 = vunpack.c.l.b16 %v228
    %v520 = vunpack.c.l.b16 %v229
    %v521 = vunpack.c.l.b16 %v230
    %v522 = vunpack.c.l.b16 %v231
    %v523 = vpack.c.b16 %v396, %v395
    %v524 = vpack.c.b16 %v398, %v397
    %v525 = vpack.c.b16 %v400, %v399
    %v526 = vpack.c.b16 %v402, %v401
    %v527 = vpack.c.b16 %v404, %v403
    %v528 = vpack.c.b16 %v406, %v405
    %v529 = vpack.c.b16 %v408, %v407
    %v530 = vpack.c.b16 %v410, %v409
    %v531 = vpack.c.b16 %v412, %v411
    %v532 = vpack.c.b16 %v414, %v413
    %v533 = vpack.c.b16 %v416, %v415
    %v534 = vpack.c.b16 %v418, %v417
    %v535 = vpack.c.b16 %v420, %v419
    %v536 = vpack.c.b16 %v422, %v421
    %v537 = vpack.c.b16 %v424, %v423
    %v538 = vpack.c.b16 %v426, %v425
    %v539 = vpack.c.b16 %v428, %v427
    %v540 = vpack.c.b16 %v430, %v429
    %v541 = vpack.c.b16 %v432, %v431
    %v542 = vpack.c.b16 %v434, %v433
    %v543 = vpack.c.b16 %v436, %v435
    %v544 = vpack.c.b16 %v438, %v437
    %v545 = vpack.c.b16 %v440, %v439
    %v546 = vpack.c.b16 %v442, %v441
    %v547 = vpack.c.b16 %v444, %v443
    %v548 = vpack.c.b16 %v446, %v445
    %v549 = vpack.c.b16 %v448, %v447
    %v550 = vpack.c.b16 %v450, %v449
    %v551 = vpack.c.b16 %v452, %v451
    %v552 = vpack.c.b16 %v454, %v453
    %v553 = vpack.c.b16 %v456, %v455
    %v554 = vpack.c.b16 %v458, %v457
    %v555 = vpack.c.b16 %v460, %v459
    %v556 = vpack.c.b16 %v462, %v461
    %v557 = vpack.c.b16 %v464, %v463
    %v558 = vpack.c.b16 %v466, %v465
    %v559 = vpack.c.b16 %v468, %v467
    %v560 = vpack.c.b16 %v470, %v469
    %v561 = vpack.c.b16 %v472, %v471
    %v562 = vpack.c.b16 %v474, %v473
    %v563 = vpack.c.b16 %v476, %v475
    %v564 = vpack.c.b16 %v478, %v477
    %v565 = vpack.c.b16 %v480, %v479
    %v566 = vpack.c.b16 %v482, %v481
    %v567 = vpack.c.b16 %v484, %v483
    %v568 = vpack.c.b16 %v486, %v485
    %v569 = vpack.c.b16 %v488, %v487
    %v570 = vpack.c.b16 %v490, %v489
    %v571 = vpack.c.b16 %v492, %v491
    %v572 = vpack.c.b16 %v494, %v493
    %v573 = vpack.c.b16 %v496, %v495
    %v574 = vpack.c.b16 %v498, %v497
    %v575 = vpack.c.b16 %v500, %v499
    %v576 = vpack.c.b16 %v502, %v501
    %v577 = vpack.c.b16 %v504, %v503
    %v578 = vpack.c.b16 %v506, %v505
    %v579 = vpack.c.b16 %v508, %v507
    %v580 = vpack.c.b16 %v510, %v509
    %v581 = vpack.c.b16 %v512, %v511
    %v582 = vpack.c.b16 %v514, %v513
    %v583 = vpack.c.b16 %v516, %v515
    %v584 = vpack.c.b16 %v518, %v517
    %v585 = vpack.c.b16 %v520, %v519
    %v586 = vpack.c.b16 %v522, %v521
    %651 = vmatprep.subr.bf16.mxu0 0
    %652 = vmatpush1.bf16.msra.mxu0 %v530
    %653 = vmatprep.subr.bf16.mxu0 0
    %654 = vmatpush1.bf16.msra.mxu0 %v529
    %655 = vmatprep.subr.bf16.mxu0 0
    %656 = vmatpush1.bf16.msra.mxu0 %v528
    %657 = vmatprep.subr.bf16.mxu0 0
    %658 = vmatpush1.bf16.msra.mxu0 %v527
    %659 = vmatprep.subr.bf16.mxu0 0
    %660 = vmatpush1.bf16.msra.mxu0 %v526
    %661 = vmatprep.subr.bf16.mxu0 0
    %662 = vmatpush1.bf16.msra.mxu0 %v525
    %663 = vmatprep.subr.bf16.mxu0 0
    %664 = vmatpush1.bf16.msra.mxu0 %v524
    %665 = vmatprep.subr.bf16.mxu0 0
    %666 = vmatpush1.bf16.msra.mxu0 %v523
    %667 = vmatprep.subr.bf16.mxu0 0
    %668 = vmatpush2.bf16.msra.mxu0 %v538
    %669 = vmatprep.subr.bf16.mxu0 0
    %670 = vmatpush2.bf16.msra.mxu0 %v537
    %671 = vmatprep.subr.bf16.mxu0 0
    %672 = vmatpush2.bf16.msra.mxu0 %v536
    %673 = vmatprep.subr.bf16.mxu0 0
    %674 = vmatpush2.bf16.msra.mxu0 %v535
    %675 = vmatprep.subr.bf16.mxu0 0
    %676 = vmatpush2.bf16.msra.mxu0 %v534
    %677 = vmatprep.subr.bf16.mxu0 0
    %678 = vmatpush2.bf16.msra.mxu0 %v533
    %679 = vmatprep.subr.bf16.mxu0 0
    %680 = vmatpush2.bf16.msra.mxu0 %v532
    %681 = vmatprep.subr.bf16.mxu0 0
    %682 = vmatpush2.bf16.msra.mxu0 %v531
    %683 = vmatprep.mubr.bf16.mxu0 %v252
    %684 = vmatmul.mubr.bf16.gmra.mxu0 %v251
    %v685 = vpop.f32.mrf.mxu0
    %v686 = vadd.f32 %v237, %v685
    %v687 = vpop.f32.mrf.mxu0
    %v688 = vpop.f32.mrf.mxu0
    %v689 = vpop.f32.mrf.mxu0
    %690 = vdwg.mxu0
    %691 = vmatprep.subr.bf16.mxu0 0
    %692 = vmatpush1.bf16.msra.mxu0 %v546
    %693 = vmatprep.subr.bf16.mxu0 0
    %694 = vmatpush1.bf16.msra.mxu0 %v545
    %695 = vmatprep.subr.bf16.mxu0 0
    %696 = vmatpush1.bf16.msra.mxu0 %v544
    %697 = vmatprep.subr.bf16.mxu0 0
    %698 = vmatpush1.bf16.msra.mxu0 %v543
    %699 = vmatprep.subr.bf16.mxu0 0
    %700 = vmatpush1.bf16.msra.mxu0 %v542
    %701 = vmatprep.subr.bf16.mxu0 0
    %702 = vmatpush1.bf16.msra.mxu0 %v541
    %703 = vmatprep.subr.bf16.mxu0 0
    %704 = vmatpush1.bf16.msra.mxu0 %v540
    %705 = vmatprep.subr.bf16.mxu0 0
    %706 = vmatpush1.bf16.msra.mxu0 %v539
    %707 = vmatprep.subr.bf16.mxu0 0
    %708 = vmatpush2.bf16.msra.mxu0 %v554
    %709 = vmatprep.subr.bf16.mxu0 0
    %710 = vmatpush2.bf16.msra.mxu0 %v553
    %711 = vmatprep.subr.bf16.mxu0 0
    %712 = vmatpush2.bf16.msra.mxu0 %v552
    %713 = vmatprep.subr.bf16.mxu0 0
    %714 = vmatpush2.bf16.msra.mxu0 %v551
    %715 = vmatprep.subr.bf16.mxu0 0
    %716 = vmatpush2.bf16.msra.mxu0 %v550
    %717 = vmatprep.subr.bf16.mxu0 0
    %718 = vmatpush2.bf16.msra.mxu0 %v549
    %719 = vmatprep.subr.bf16.mxu0 0
    %720 = vmatpush2.bf16.msra.mxu0 %v548
    %721 = vmatprep.subr.bf16.mxu0 0
    %722 = vmatpush2.bf16.msra.mxu0 %v547
    %723 = vmatprep.mubr.bf16.mxu0 %v254
    %724 = vmatmul.mubr.bf16.gmra.mxu0 %v253
    %v725 = vpop.f32.mrf.mxu0
    %v726 = vadd.f32 %v686, %v725
    %v727 = vpop.f32.mrf.mxu0
    %v728 = vpop.f32.mrf.mxu0
    %v729 = vpop.f32.mrf.mxu0
    %730 = vdwg.mxu0
    %731 = vmatprep.subr.bf16.mxu0 0
    %732 = vmatpush1.bf16.msra.mxu0 %v562
    %733 = vmatprep.subr.bf16.mxu0 0
    %734 = vmatpush1.bf16.msra.mxu0 %v561
    %735 = vmatprep.subr.bf16.mxu0 0
    %736 = vmatpush1.bf16.msra.mxu0 %v560
    %737 = vmatprep.subr.bf16.mxu0 0
    %738 = vmatpush1.bf16.msra.mxu0 %v559
    %739 = vmatprep.subr.bf16.mxu0 0
    %740 = vmatpush1.bf16.msra.mxu0 %v558
    %741 = vmatprep.subr.bf16.mxu0 0
    %742 = vmatpush1.bf16.msra.mxu0 %v557
    %743 = vmatprep.subr.bf16.mxu0 0
    %744 = vmatpush1.bf16.msra.mxu0 %v556
    %745 = vmatprep.subr.bf16.mxu0 0
    %746 = vmatpush1.bf16.msra.mxu0 %v555
    %747 = vmatprep.subr.bf16.mxu0 0
    %748 = vmatpush2.bf16.msra.mxu0 %v570
    %749 = vmatprep.subr.bf16.mxu0 0
    %750 = vmatpush2.bf16.msra.mxu0 %v569
    %751 = vmatprep.subr.bf16.mxu0 0
    %752 = vmatpush2.bf16.msra.mxu0 %v568
    %753 = vmatprep.subr.bf16.mxu0 0
    %754 = vmatpush2.bf16.msra.mxu0 %v567
    %755 = vmatprep.subr.bf16.mxu0 0
    %756 = vmatpush2.bf16.msra.mxu0 %v566
    %757 = vmatprep.subr.bf16.mxu0 0
    %758 = vmatpush2.bf16.msra.mxu0 %v565
    %759 = vmatprep.subr.bf16.mxu0 0
    %760 = vmatpush2.bf16.msra.mxu0 %v564
    %761 = vmatprep.subr.bf16.mxu0 0
    %762 = vmatpush2.bf16.msra.mxu0 %v563
    %763 = vmatprep.mubr.bf16.mxu0 %v256
    %764 = vmatmul.mubr.bf16.gmra.mxu0 %v255
    %v765 = vpop.f32.mrf.mxu0
    %v766 = vadd.f32 %v726, %v765
    %v767 = vpop.f32.mrf.mxu0
    %v768 = vpop.f32.mrf.mxu0
    %v769 = vpop.f32.mrf.mxu0
    %770 = vdwg.mxu0
    %771 = vmatprep.subr.bf16.mxu0 0
    %772 = vmatpush1.bf16.msra.mxu0 %v578
    %773 = vmatprep.subr.bf16.mxu0 0
    %774 = vmatpush1.bf16.msra.mxu0 %v577
    %775 = vmatprep.subr.bf16.mxu0 0
    %776 = vmatpush1.bf16.msra.mxu0 %v576
    %777 = vmatprep.subr.bf16.mxu0 0
    %778 = vmatpush1.bf16.msra.mxu0 %v575
    %779 = vmatprep.subr.bf16.mxu0 0
    %780 = vmatpush1.bf16.msra.mxu0 %v574
    %781 = vmatprep.subr.bf16.mxu0 0
    %782 = vmatpush1.bf16.msra.mxu0 %v573
    %783 = vmatprep.subr.bf16.mxu0 0
    %784 = vmatpush1.bf16.msra.mxu0 %v572
    %785 = vmatprep.subr.bf16.mxu0 0
    %786 = vmatpush1.bf16.msra.mxu0 %v571
    %787 = vmatprep.subr.bf16.mxu0 0
    %788 = vmatpush2.bf16.msra.mxu0 %v586
    %789 = vmatprep.subr.bf16.mxu0 0
    %790 = vmatpush2.bf16.msra.mxu0 %v585
    %791 = vmatprep.subr.bf16.mxu0 0
    %792 = vmatpush2.bf16.msra.mxu0 %v584
    %793 = vmatprep.subr.bf16.mxu0 0
    %794 = vmatpush2.bf16.msra.mxu0 %v583
    %795 = vmatprep.subr.bf16.mxu0 0
    %796 = vmatpush2.bf16.msra.mxu0 %v582
    %797 = vmatprep.subr.bf16.mxu0 0
    %798 = vmatpush2.bf16.msra.mxu0 %v581
    %799 = vmatprep.subr.bf16.mxu0 0
    %800 = vmatpush2.bf16.msra.mxu0 %v580
    %801 = vmatprep.subr.bf16.mxu0 0
    %802 = vmatpush2.bf16.msra.mxu0 %v579
    %803 = vmatprep.mubr.bf16.mxu0 %v258
    %804 = vmatmul.mubr.bf16.gmra.mxu0 %v257
    %v805 = vpop.f32.mrf.mxu0
    %v806 = vadd.f32 %v766, %v805
    %v807 = vpop.f32.mrf.mxu0
    %v808 = vpop.f32.mrf.mxu0
    %v809 = vpop.f32.mrf.mxu0
    %810 = vdwg.mxu0
    %v811 = vmax.f32 %v806, 0.0
    %v812 = vpack.c.bf16 %v811, %v811
    %v813 = vld [vmem:[#allocation7] sm:$0xf]
    %v814 = vld [vmem:[#allocation7 + $0x4] sm:$0xf]
    %v815 = vld [vmem:[#allocation7 + $0x8] sm:$0xf]
    %v816 = vld [vmem:[#allocation7 + $0xc] sm:$0xf]
    %v817 = vld [vmem:[#allocation7 + $0x10] sm:$0xf]
    %v818 = vld [vmem:[#allocation7 + $0x14] sm:$0xf]
    %v819 = vld [vmem:[#allocation7 + $0x18] sm:$0xf]
    %v820 = vld [vmem:[#allocation7 + $0x1c] sm:$0xf]
    %v821 = vld [vmem:[#allocation7 + $0x20] sm:$0xf]
    %v822 = vld [vmem:[#allocation7 + $0x24] sm:$0xf]
    %v823 = vld [vmem:[#allocation7 + $0x28] sm:$0xf]
    %v824 = vld [vmem:[#allocation7 + $0x2c] sm:$0xf]
    %v825 = vld [vmem:[#allocation7 + $0x30] sm:$0xf]
    %v826 = vld [vmem:[#allocation7 + $0x34] sm:$0xf]
    %v827 = vld [vmem:[#allocation7 + $0x38] sm:$0xf]
    %v828 = vld [vmem:[#allocation7 + $0x3c] sm:$0xf]
    %v829 = vld [vmem:[%s4] sm:$0x1]
    %v831 = vlaneseq
    %v832 = vshrl.u32 %v831, 7
    %v833 = vsub.s32 0, %v832
    %v834 = vrot.slane %v829, %v833
    %v852 = vunpack.c.l.b16 %v813
    %v853 = vunpack.c.l.b16 %v814
    %v854 = vunpack.c.l.b16 %v815
    %v855 = vunpack.c.l.b16 %v816
    %v856 = vunpack.c.l.b16 %v817
    %v857 = vunpack.c.l.b16 %v818
    %v858 = vunpack.c.l.b16 %v819
    %v859 = vunpack.c.l.b16 %v820
    %v860 = vunpack.c.l.b16 %v821
    %v861 = vunpack.c.l.b16 %v822
    %v862 = vunpack.c.l.b16 %v823
    %v863 = vunpack.c.l.b16 %v824
    %v864 = vunpack.c.l.b16 %v825
    %v865 = vunpack.c.l.b16 %v826
    %v866 = vunpack.c.l.b16 %v827
    %v867 = vunpack.c.l.b16 %v828
    %v868 = vpack.c.b16 %v853, %v852
    %v869 = vpack.c.b16 %v855, %v854
    %v870 = vpack.c.b16 %v857, %v856
    %v871 = vpack.c.b16 %v859, %v858
    %v872 = vpack.c.b16 %v861, %v860
    %v873 = vpack.c.b16 %v863, %v862
    %v874 = vpack.c.b16 %v865, %v864
    %v875 = vpack.c.b16 %v867, %v866
    %884 = vmatprep.subr.bf16.mxu0 0
    %885 = vmatpush1.bf16.msra.mxu0 %v875
    %886 = vmatprep.subr.bf16.mxu0 0
    %887 = vmatpush1.bf16.msra.mxu0 %v874
    %888 = vmatprep.subr.bf16.mxu0 0
    %889 = vmatpush1.bf16.msra.mxu0 %v873
    %890 = vmatprep.subr.bf16.mxu0 0
    %891 = vmatpush1.bf16.msra.mxu0 %v872
    %892 = vmatprep.subr.bf16.mxu0 0
    %893 = vmatpush1.bf16.msra.mxu0 %v871
    %894 = vmatprep.subr.bf16.mxu0 0
    %895 = vmatpush1.bf16.msra.mxu0 %v870
    %896 = vmatprep.subr.bf16.mxu0 0
    %897 = vmatpush1.bf16.msra.mxu0 %v869
    %898 = vmatprep.subr.bf16.mxu0 0
    %899 = vmatpush1.bf16.msra.mxu0 %v868
    %900 = vmatprep.subr.bf16.mxu0 0
    %901 = vmatpush2.bf16.msra.mxu0 0
    %902 = vmatprep.subr.bf16.mxu0 0
    %903 = vmatpush2.bf16.msra.mxu0 0
    %904 = vmatprep.subr.bf16.mxu0 0
    %905 = vmatpush2.bf16.msra.mxu0 0
    %906 = vmatprep.subr.bf16.mxu0 0
    %907 = vmatpush2.bf16.msra.mxu0 0
    %908 = vmatprep.subr.bf16.mxu0 0
    %909 = vmatpush2.bf16.msra.mxu0 0
    %910 = vmatprep.subr.bf16.mxu0 0
    %911 = vmatpush2.bf16.msra.mxu0 0
    %912 = vmatprep.subr.bf16.mxu0 0
    %913 = vmatpush2.bf16.msra.mxu0 0
    %914 = vmatprep.subr.bf16.mxu0 0
    %915 = vmatpush2.bf16.msra.mxu0 0
    %916 = vmatprep.mubr.bf16.mxu0 0
    %917 = vmatmul.mubr.bf16.gmra.mxu0 %v812
    %v918 = vpop.f32.mrf.mxu0
    %v919 = vadd.f32 %v834, %v918
    %v920 = vpop.f32.mrf.mxu0
    %v921 = vpop.f32.mrf.mxu0
    %v922 = vpop.f32.mrf.mxu0
    %923 = vdwg.mxu0
    %v924 = vpack.c.bf16 %v919, %v919
    %v925 = vld [vmem:[#allocation8] sm:$0xf]
    %v926 = vld [vmem:[#allocation8 + $0x4] sm:$0xf]
    %v927 = vld [vmem:[#allocation8 + $0x8] sm:$0xf]
    %v928 = vld [vmem:[#allocation8 + $0xc] sm:$0xf]
    %v929 = vld [vmem:[#allocation8 + $0x10] sm:$0xf]
    %v930 = vld [vmem:[#allocation8 + $0x14] sm:$0xf]
    %v931 = vld [vmem:[#allocation8 + $0x18] sm:$0xf]
    %v932 = vld [vmem:[#allocation8 + $0x1c] sm:$0xf]
    %v933 = vld [vmem:[#allocation8 + $0x20] sm:$0xf]
    %v934 = vld [vmem:[#allocation8 + $0x24] sm:$0xf]
    %v935 = vld [vmem:[#allocation8 + $0x28] sm:$0xf]
    %v936 = vld [vmem:[#allocation8 + $0x2c] sm:$0xf]
    %v937 = vld [vmem:[#allocation8 + $0x30] sm:$0xf]
    %v938 = vld [vmem:[#allocation8 + $0x34] sm:$0xf]
    %v939 = vld [vmem:[#allocation8 + $0x38] sm:$0xf]
    %v940 = vld [vmem:[#allocation8 + $0x3c] sm:$0xf]
    %v941 = vld [vmem:[%s6] sm:$0x1]
    %v943 = vlaneseq
    %v944 = vshrl.u32 %v943, 7
    %v945 = vsub.s32 0, %v944
    %v946 = vrot.slane %v941, %v945
    %v964 = vunpack.c.l.b16 %v925
    %v965 = vunpack.c.l.b16 %v926
    %v966 = vunpack.c.l.b16 %v927
    %v967 = vunpack.c.l.b16 %v928
    %v968 = vunpack.c.l.b16 %v929
    %v969 = vunpack.c.l.b16 %v930
    %v970 = vunpack.c.l.b16 %v931
    %v971 = vunpack.c.l.b16 %v932
    %v972 = vunpack.c.l.b16 %v933
    %v973 = vunpack.c.l.b16 %v934
    %v974 = vunpack.c.l.b16 %v935
    %v975 = vunpack.c.l.b16 %v936
    %v976 = vunpack.c.l.b16 %v937
    %v977 = vunpack.c.l.b16 %v938
    %v978 = vunpack.c.l.b16 %v939
    %v979 = vunpack.c.l.b16 %v940
    %v980 = vpack.c.b16 %v965, %v964
    %v981 = vpack.c.b16 %v967, %v966
    %v982 = vpack.c.b16 %v969, %v968
    %v983 = vpack.c.b16 %v971, %v970
    %v984 = vpack.c.b16 %v973, %v972
    %v985 = vpack.c.b16 %v975, %v974
    %v986 = vpack.c.b16 %v977, %v976
    %v987 = vpack.c.b16 %v979, %v978
    %996 = vmatprep.subr.bf16.mxu0 0
    %997 = vmatpush1.bf16.msra.mxu0 %v987
    %998 = vmatprep.subr.bf16.mxu0 0
    %999 = vmatpush1.bf16.msra.mxu0 %v986
    %1000 = vmatprep.subr.bf16.mxu0 0
    %1001 = vmatpush1.bf16.msra.mxu0 %v985
    %1002 = vmatprep.subr.bf16.mxu0 0
    %1003 = vmatpush1.bf16.msra.mxu0 %v984
    %1004 = vmatprep.subr.bf16.mxu0 0
    %1005 = vmatpush1.bf16.msra.mxu0 %v983
    %1006 = vmatprep.subr.bf16.mxu0 0
    %1007 = vmatpush1.bf16.msra.mxu0 %v982
    %1008 = vmatprep.subr.bf16.mxu0 0
    %1009 = vmatpush1.bf16.msra.mxu0 %v981
    %1010 = vmatprep.subr.bf16.mxu0 0
    %1011 = vmatpush1.bf16.msra.mxu0 %v980
    %1012 = vmatprep.subr.bf16.mxu0 0
    %1013 = vmatpush2.bf16.msra.mxu0 0
    %1014 = vmatprep.subr.bf16.mxu0 0
    %1015 = vmatpush2.bf16.msra.mxu0 0
    %1016 = vmatprep.subr.bf16.mxu0 0
    %1017 = vmatpush2.bf16.msra.mxu0 0
    %1018 = vmatprep.subr.bf16.mxu0 0
    %1019 = vmatpush2.bf16.msra.mxu0 0
    %1020 = vmatprep.subr.bf16.mxu0 0
    %1021 = vmatpush2.bf16.msra.mxu0 0
    %1022 = vmatprep.subr.bf16.mxu0 0
    %1023 = vmatpush2.bf16.msra.mxu0 0
    %1024 = vmatprep.subr.bf16.mxu0 0
    %1025 = vmatpush2.bf16.msra.mxu0 0
    %1026 = vmatprep.subr.bf16.mxu0 0
    %1027 = vmatpush2.bf16.msra.mxu0 0
    %1028 = vmatprep.mubr.bf16.mxu0 0
    %1029 = vmatmul.mubr.bf16.gmra.mxu0 %v924
    %v1030 = vpop.f32.mrf.mxu0
    %v1031 = vadd.f32 %v946, %v1030
    %v1032 = vpop.f32.mrf.mxu0
    %v1033 = vpop.f32.mrf.mxu0
    %v1034 = vpop.f32.mrf.mxu0
    %1035 = vdwg.mxu0
    %v1036 = vmax.f32 %v1031, 0.0
    %v1037 = vpack.c.bf16 %v1036, %v1036
    %v1038 = vld [vmem:[#allocation10] sm:$0xff]
    %v1039 = vld [vmem:[#allocation10 + $0x8] sm:$0xff]
    %v1040 = vld [vmem:[#allocation10 + $0x10] sm:$0xff]
    %v1041 = vld [vmem:[#allocation10 + $0x18] sm:$0xff]
    %v1042 = vld [vmem:[#allocation10 + $0x20] sm:$0xff]
    %v1043 = vld [vmem:[#allocation10 + $0x28] sm:$0xff]
    %v1044 = vld [vmem:[#allocation10 + $0x30] sm:$0xff]
    %v1045 = vld [vmem:[#allocation10 + $0x38] sm:$0xff]
    %v1046 = vld [vmem:[#allocation10 + $0x40] sm:$0xff]
    %v1047 = vld [vmem:[#allocation10 + $0x48] sm:$0xff]
    %v1048 = vld [vmem:[#allocation10 + $0x50] sm:$0xff]
    %v1049 = vld [vmem:[#allocation10 + $0x58] sm:$0xff]
    %v1050 = vld [vmem:[#allocation10 + $0x60] sm:$0xff]
    %v1051 = vld [vmem:[#allocation10 + $0x68] sm:$0xff]
    %v1052 = vld [vmem:[#allocation10 + $0x70] sm:$0xff]
    %v1053 = vld [vmem:[#allocation10 + $0x78] sm:$0xff]
    %v1054 = vld [vmem:[#allocation10 + $0x80] sm:$0xff]
    %v1055 = vld [vmem:[#allocation10 + $0x88] sm:$0xff]
    %v1056 = vld [vmem:[#allocation10 + $0x90] sm:$0xff]
    %v1057 = vld [vmem:[#allocation10 + $0x98] sm:$0xff]
    %v1058 = vld [vmem:[#allocation10 + $0xa0] sm:$0xff]
    %v1059 = vld [vmem:[#allocation10 + $0xa8] sm:$0xff]
    %v1060 = vld [vmem:[#allocation10 + $0xb0] sm:$0xff]
    %v1061 = vld [vmem:[#allocation10 + $0xb8] sm:$0xff]
    %v1062 = vld [vmem:[#allocation10 + $0xc0] sm:$0xff]
    %v1063 = vld [vmem:[#allocation10 + $0xc8] sm:$0xff]
    %v1064 = vld [vmem:[#allocation10 + $0xd0] sm:$0xff]
    %v1065 = vld [vmem:[#allocation10 + $0xd8] sm:$0xff]
    %v1066 = vld [vmem:[#allocation10 + $0xe0] sm:$0xff]
    %v1067 = vld [vmem:[#allocation10 + $0xe8] sm:$0xff]
    %v1068 = vld [vmem:[#allocation10 + $0xf0] sm:$0xff]
    %v1069 = vld [vmem:[#allocation10 + $0xf8] sm:$0xff]
    %v1070 = vld [vmem:[#allocation10 + $0x100] sm:$0xff]
    %v1071 = vld [vmem:[#allocation10 + $0x108] sm:$0xff]
    %v1072 = vld [vmem:[#allocation10 + $0x110] sm:$0xff]
    %v1073 = vld [vmem:[#allocation10 + $0x118] sm:$0xff]
    %v1074 = vld [vmem:[#allocation10 + $0x120] sm:$0xff]
    %v1075 = vld [vmem:[#allocation10 + $0x128] sm:$0xff]
    %v1076 = vld [vmem:[#allocation10 + $0x130] sm:$0xff]
    %v1077 = vld [vmem:[#allocation10 + $0x138] sm:$0xff]
    %v1078 = vld [vmem:[#allocation10 + $0x140] sm:$0xff]
    %v1079 = vld [vmem:[#allocation10 + $0x148] sm:$0xff]
    %v1080 = vld [vmem:[#allocation10 + $0x150] sm:$0xff]
    %v1081 = vld [vmem:[#allocation10 + $0x158] sm:$0xff]
    %v1082 = vld [vmem:[#allocation10 + $0x160] sm:$0xff]
    %v1083 = vld [vmem:[#allocation10 + $0x168] sm:$0xff]
    %v1084 = vld [vmem:[#allocation10 + $0x170] sm:$0xff]
    %v1085 = vld [vmem:[#allocation10 + $0x178] sm:$0xff]
    %v1086 = vld [vmem:[#allocation10 + $0x180] sm:$0xff]
    %v1087 = vld [vmem:[#allocation10 + $0x188] sm:$0xff]
    %v1088 = vld [vmem:[#allocation10 + $0x190] sm:$0xff]
    %v1089 = vld [vmem:[#allocation10 + $0x198] sm:$0xff]
    %v1090 = vld [vmem:[#allocation10 + $0x1a0] sm:$0xff]
    %v1091 = vld [vmem:[#allocation10 + $0x1a8] sm:$0xff]
    %v1092 = vld [vmem:[#allocation10 + $0x1b0] sm:$0xff]
    %v1093 = vld [vmem:[#allocation10 + $0x1b8] sm:$0xff]
    %v1094 = vld [vmem:[#allocation10 + $0x1c0] sm:$0xff]
    %v1095 = vld [vmem:[#allocation10 + $0x1c8] sm:$0xff]
    %v1096 = vld [vmem:[#allocation10 + $0x1d0] sm:$0xff]
    %v1097 = vld [vmem:[#allocation10 + $0x1d8] sm:$0xff]
    %v1098 = vld [vmem:[#allocation10 + $0x1e0] sm:$0xff]
    %v1099 = vld [vmem:[#allocation10 + $0x1e8] sm:$0xff]
    %v1100 = vld [vmem:[#allocation10 + $0x1f0] sm:$0xff]
    %v1101 = vld [vmem:[#allocation10 + $0x1f8] sm:$0xff]
    %v1102 = vld [vmem:[%s8] sm:$0xff]
    %v1104 = vlaneseq
    %v1105 = vshrl.u32 %v1104, 7
    %v1106 = vsub.s32 0, %v1105
    %v1107 = vrot.slane %v1102, %v1106
    %v1108 = vlaneseq
    %v1109 = vshrl.u32 %v1108, 7
    %v1110 = vsub.s32 1, %v1109
    %v1111 = vrot.slane %v1102, %v1110
    %v1112 = vlaneseq
    %v1113 = vshrl.u32 %v1112, 7
    %v1114 = vsub.s32 2, %v1113
    %v1115 = vrot.slane %v1102, %v1114
    %v1116 = vlaneseq
    %v1117 = vshrl.u32 %v1116, 7
    %v1118 = vsub.s32 3, %v1117
    %v1119 = vrot.slane %v1102, %v1118
    %v1120 = vlaneseq
    %v1121 = vshrl.u32 %v1120, 7
    %v1122 = vsub.s32 4, %v1121
    %v1123 = vrot.slane %v1102, %v1122
    %v1124 = vlaneseq
    %v1125 = vshrl.u32 %v1124, 7
    %v1126 = vsub.s32 5, %v1125
    %v1127 = vrot.slane %v1102, %v1126
    %v1128 = vlaneseq
    %v1129 = vshrl.u32 %v1128, 7
    %v1130 = vsub.s32 6, %v1129
    %v1131 = vrot.slane %v1102, %v1130
    %v1132 = vlaneseq
    %v1133 = vshrl.u32 %v1132, 7
    %v1134 = vsub.s32 7, %v1133
    %v1135 = vrot.slane %v1102, %v1134
    %v1208 = vunpack.c.l.b16 %v1038
    %v1209 = vunpack.c.h.b16 %v1038
    %v1210 = vunpack.c.l.b16 %v1039
    %v1211 = vunpack.c.h.b16 %v1039
    %v1212 = vunpack.c.l.b16 %v1040
    %v1213 = vunpack.c.h.b16 %v1040
    %v1214 = vunpack.c.l.b16 %v1041
    %v1215 = vunpack.c.h.b16 %v1041
    %v1216 = vunpack.c.l.b16 %v1042
    %v1217 = vunpack.c.h.b16 %v1042
    %v1218 = vunpack.c.l.b16 %v1043
    %v1219 = vunpack.c.h.b16 %v1043
    %v1220 = vunpack.c.l.b16 %v1044
    %v1221 = vunpack.c.h.b16 %v1044
    %v1222 = vunpack.c.l.b16 %v1045
    %v1223 = vunpack.c.h.b16 %v1045
    %v1224 = vunpack.c.l.b16 %v1046
    %v1225 = vunpack.c.h.b16 %v1046
    %v1226 = vunpack.c.l.b16 %v1047
    %v1227 = vunpack.c.h.b16 %v1047
    %v1228 = vunpack.c.l.b16 %v1048
    %v1229 = vunpack.c.h.b16 %v1048
    %v1230 = vunpack.c.l.b16 %v1049
    %v1231 = vunpack.c.h.b16 %v1049
    %v1232 = vunpack.c.l.b16 %v1050
    %v1233 = vunpack.c.h.b16 %v1050
    %v1234 = vunpack.c.l.b16 %v1051
    %v1235 = vunpack.c.h.b16 %v1051
    %v1236 = vunpack.c.l.b16 %v1052
    %v1237 = vunpack.c.h.b16 %v1052
    %v1238 = vunpack.c.l.b16 %v1053
    %v1239 = vunpack.c.h.b16 %v1053
    %v1240 = vunpack.c.l.b16 %v1054
    %v1241 = vunpack.c.h.b16 %v1054
    %v1242 = vunpack.c.l.b16 %v1055
    %v1243 = vunpack.c.h.b16 %v1055
    %v1244 = vunpack.c.l.b16 %v1056
    %v1245 = vunpack.c.h.b16 %v1056
    %v1246 = vunpack.c.l.b16 %v1057
    %v1247 = vunpack.c.h.b16 %v1057
    %v1248 = vunpack.c.l.b16 %v1058
    %v1249 = vunpack.c.h.b16 %v1058
    %v1250 = vunpack.c.l.b16 %v1059
    %v1251 = vunpack.c.h.b16 %v1059
    %v1252 = vunpack.c.l.b16 %v1060
    %v1253 = vunpack.c.h.b16 %v1060
    %v1254 = vunpack.c.l.b16 %v1061
    %v1255 = vunpack.c.h.b16 %v1061
    %v1256 = vunpack.c.l.b16 %v1062
    %v1257 = vunpack.c.h.b16 %v1062
    %v1258 = vunpack.c.l.b16 %v1063
    %v1259 = vunpack.c.h.b16 %v1063
    %v1260 = vunpack.c.l.b16 %v1064
    %v1261 = vunpack.c.h.b16 %v1064
    %v1262 = vunpack.c.l.b16 %v1065
    %v1263 = vunpack.c.h.b16 %v1065
    %v1264 = vunpack.c.l.b16 %v1066
    %v1265 = vunpack.c.h.b16 %v1066
    %v1266 = vunpack.c.l.b16 %v1067
    %v1267 = vunpack.c.h.b16 %v1067
    %v1268 = vunpack.c.l.b16 %v1068
    %v1269 = vunpack.c.h.b16 %v1068
    %v1270 = vunpack.c.l.b16 %v1069
    %v1271 = vunpack.c.h.b16 %v1069
    %v1272 = vunpack.c.l.b16 %v1070
    %v1273 = vunpack.c.h.b16 %v1070
    %v1274 = vunpack.c.l.b16 %v1071
    %v1275 = vunpack.c.h.b16 %v1071
    %v1276 = vunpack.c.l.b16 %v1072
    %v1277 = vunpack.c.h.b16 %v1072
    %v1278 = vunpack.c.l.b16 %v1073
    %v1279 = vunpack.c.h.b16 %v1073
    %v1280 = vunpack.c.l.b16 %v1074
    %v1281 = vunpack.c.h.b16 %v1074
    %v1282 = vunpack.c.l.b16 %v1075
    %v1283 = vunpack.c.h.b16 %v1075
    %v1284 = vunpack.c.l.b16 %v1076
    %v1285 = vunpack.c.h.b16 %v1076
    %v1286 = vunpack.c.l.b16 %v1077
    %v1287 = vunpack.c.h.b16 %v1077
    %v1288 = vunpack.c.l.b16 %v1078
    %v1289 = vunpack.c.h.b16 %v1078
    %v1290 = vunpack.c.l.b16 %v1079
    %v1291 = vunpack.c.h.b16 %v1079
    %v1292 = vunpack.c.l.b16 %v1080
    %v1293 = vunpack.c.h.b16 %v1080
    %v1294 = vunpack.c.l.b16 %v1081
    %v1295 = vunpack.c.h.b16 %v1081
    %v1296 = vunpack.c.l.b16 %v1082
    %v1297 = vunpack.c.h.b16 %v1082
    %v1298 = vunpack.c.l.b16 %v1083
    %v1299 = vunpack.c.h.b16 %v1083
    %v1300 = vunpack.c.l.b16 %v1084
    %v1301 = vunpack.c.h.b16 %v1084
    %v1302 = vunpack.c.l.b16 %v1085
    %v1303 = vunpack.c.h.b16 %v1085
    %v1304 = vunpack.c.l.b16 %v1086
    %v1305 = vunpack.c.h.b16 %v1086
    %v1306 = vunpack.c.l.b16 %v1087
    %v1307 = vunpack.c.h.b16 %v1087
    %v1308 = vunpack.c.l.b16 %v1088
    %v1309 = vunpack.c.h.b16 %v1088
    %v1310 = vunpack.c.l.b16 %v1089
    %v1311 = vunpack.c.h.b16 %v1089
    %v1312 = vunpack.c.l.b16 %v1090
    %v1313 = vunpack.c.h.b16 %v1090
    %v1314 = vunpack.c.l.b16 %v1091
    %v1315 = vunpack.c.h.b16 %v1091
    %v1316 = vunpack.c.l.b16 %v1092
    %v1317 = vunpack.c.h.b16 %v1092
    %v1318 = vunpack.c.l.b16 %v1093
    %v1319 = vunpack.c.h.b16 %v1093
    %v1320 = vunpack.c.l.b16 %v1094
    %v1321 = vunpack.c.h.b16 %v1094
    %v1322 = vunpack.c.l.b16 %v1095
    %v1323 = vunpack.c.h.b16 %v1095
    %v1324 = vunpack.c.l.b16 %v1096
    %v1325 = vunpack.c.h.b16 %v1096
    %v1326 = vunpack.c.l.b16 %v1097
    %v1327 = vunpack.c.h.b16 %v1097
    %v1328 = vunpack.c.l.b16 %v1098
    %v1329 = vunpack.c.h.b16 %v1098
    %v1330 = vunpack.c.l.b16 %v1099
    %v1331 = vunpack.c.h.b16 %v1099
    %v1332 = vunpack.c.l.b16 %v1100
    %v1333 = vunpack.c.h.b16 %v1100
    %v1334 = vunpack.c.l.b16 %v1101
    %v1335 = vunpack.c.h.b16 %v1101
    %v1336 = vpack.c.b16 %v1216, %v1208
    %v1337 = vpack.c.b16 %v1217, %v1209
    %v1338 = vpack.c.b16 %v1218, %v1210
    %v1339 = vpack.c.b16 %v1219, %v1211
    %v1340 = vpack.c.b16 %v1220, %v1212
    %v1341 = vpack.c.b16 %v1221, %v1213
    %v1342 = vpack.c.b16 %v1222, %v1214
    %v1343 = vpack.c.b16 %v1223, %v1215
    %v1344 = vpack.c.b16 %v1232, %v1224
    %v1345 = vpack.c.b16 %v1233, %v1225
    %v1346 = vpack.c.b16 %v1234, %v1226
    %v1347 = vpack.c.b16 %v1235, %v1227
    %v1348 = vpack.c.b16 %v1236, %v1228
    %v1349 = vpack.c.b16 %v1237, %v1229
    %v1350 = vpack.c.b16 %v1238, %v1230
    %v1351 = vpack.c.b16 %v1239, %v1231
    %v1352 = vpack.c.b16 %v1248, %v1240
    %v1353 = vpack.c.b16 %v1249, %v1241
    %v1354 = vpack.c.b16 %v1250, %v1242
    %v1355 = vpack.c.b16 %v1251, %v1243
    %v1356 = vpack.c.b16 %v1252, %v1244
    %v1357 = vpack.c.b16 %v1253, %v1245
    %v1358 = vpack.c.b16 %v1254, %v1246
    %v1359 = vpack.c.b16 %v1255, %v1247
    %v1360 = vpack.c.b16 %v1264, %v1256
    %v1361 = vpack.c.b16 %v1265, %v1257
    %v1362 = vpack.c.b16 %v1266, %v1258
    %v1363 = vpack.c.b16 %v1267, %v1259
    %v1364 = vpack.c.b16 %v1268, %v1260
    %v1365 = vpack.c.b16 %v1269, %v1261
    %v1366 = vpack.c.b16 %v1270, %v1262
    %v1367 = vpack.c.b16 %v1271, %v1263
    %v1368 = vpack.c.b16 %v1280, %v1272
    %v1369 = vpack.c.b16 %v1281, %v1273
    %v1370 = vpack.c.b16 %v1282, %v1274
    %v1371 = vpack.c.b16 %v1283, %v1275
    %v1372 = vpack.c.b16 %v1284, %v1276
    %v1373 = vpack.c.b16 %v1285, %v1277
    %v1374 = vpack.c.b16 %v1286, %v1278
    %v1375 = vpack.c.b16 %v1287, %v1279
    %v1376 = vpack.c.b16 %v1296, %v1288
    %v1377 = vpack.c.b16 %v1297, %v1289
    %v1378 = vpack.c.b16 %v1298, %v1290
    %v1379 = vpack.c.b16 %v1299, %v1291
    %v1380 = vpack.c.b16 %v1300, %v1292
    %v1381 = vpack.c.b16 %v1301, %v1293
    %v1382 = vpack.c.b16 %v1302, %v1294
    %v1383 = vpack.c.b16 %v1303, %v1295
    %v1384 = vpack.c.b16 %v1312, %v1304
    %v1385 = vpack.c.b16 %v1313, %v1305
    %v1386 = vpack.c.b16 %v1314, %v1306
    %v1387 = vpack.c.b16 %v1315, %v1307
    %v1388 = vpack.c.b16 %v1316, %v1308
    %v1389 = vpack.c.b16 %v1317, %v1309
    %v1390 = vpack.c.b16 %v1318, %v1310
    %v1391 = vpack.c.b16 %v1319, %v1311
    %v1392 = vpack.c.b16 %v1328, %v1320
    %v1393 = vpack.c.b16 %v1329, %v1321
    %v1394 = vpack.c.b16 %v1330, %v1322
    %v1395 = vpack.c.b16 %v1331, %v1323
    %v1396 = vpack.c.b16 %v1332, %v1324
    %v1397 = vpack.c.b16 %v1333, %v1325
    %v1398 = vpack.c.b16 %v1334, %v1326
    %v1399 = vpack.c.b16 %v1335, %v1327
    %1464 = vmatprep.subr.bf16.mxu0 %v1393
    %1465 = vmatpush1.bf16.msra.mxu0 %v1392
    %1466 = vmatprep.subr.bf16.mxu0 %v1385
    %1467 = vmatpush1.bf16.msra.mxu0 %v1384
    %1468 = vmatprep.subr.bf16.mxu0 %v1377
    %1469 = vmatpush1.bf16.msra.mxu0 %v1376
    %1470 = vmatprep.subr.bf16.mxu0 %v1369
    %1471 = vmatpush1.bf16.msra.mxu0 %v1368
    %1472 = vmatprep.subr.bf16.mxu0 %v1361
    %1473 = vmatpush1.bf16.msra.mxu0 %v1360
    %1474 = vmatprep.subr.bf16.mxu0 %v1353
    %1475 = vmatpush1.bf16.msra.mxu0 %v1352
    %1476 = vmatprep.subr.bf16.mxu0 %v1345
    %1477 = vmatpush1.bf16.msra.mxu0 %v1344
    %1478 = vmatprep.subr.bf16.mxu0 %v1337
    %1479 = vmatpush1.bf16.msra.mxu0 %v1336
    %1480 = vmatprep.subr.bf16.mxu0 0
    %1481 = vmatpush2.bf16.msra.mxu0 0
    %1482 = vmatprep.subr.bf16.mxu0 0
    %1483 = vmatpush2.bf16.msra.mxu0 0
    %1484 = vmatprep.subr.bf16.mxu0 0
    %1485 = vmatpush2.bf16.msra.mxu0 0
    %1486 = vmatprep.subr.bf16.mxu0 0
    %1487 = vmatpush2.bf16.msra.mxu0 0
    %1488 = vmatprep.subr.bf16.mxu0 0
    %1489 = vmatpush2.bf16.msra.mxu0 0
    %1490 = vmatprep.subr.bf16.mxu0 0
    %1491 = vmatpush2.bf16.msra.mxu0 0
    %1492 = vmatprep.subr.bf16.mxu0 0
    %1493 = vmatpush2.bf16.msra.mxu0 0
    %1494 = vmatprep.subr.bf16.mxu0 0
    %1495 = vmatpush2.bf16.msra.mxu0 0
    %1496 = vmatprep.mubr.bf16.mxu0 0
    %1497 = vmatmul.mubr.bf16.gmra.mxu0 %v1037
    %v1498 = vpop.f32.mrf.mxu0
    %v1499 = vadd.f32 %v1107, %v1498
    %v1500 = vpop.f32.mrf.mxu0
    %v1501 = vadd.f32 %v1111, %v1500
    %v1502 = vpop.f32.mrf.mxu0
    %v1503 = vpop.f32.mrf.mxu0
    %1504 = vdwg.mxu0
    %1505 = vmatprep.subr.bf16.mxu0 %v1395
    %1506 = vmatpush1.bf16.msra.mxu0 %v1394
    %1507 = vmatprep.subr.bf16.mxu0 %v1387
    %1508 = vmatpush1.bf16.msra.mxu0 %v1386
    %1509 = vmatprep.subr.bf16.mxu0 %v1379
    %1510 = vmatpush1.bf16.msra.mxu0 %v1378
    %1511 = vmatprep.subr.bf16.mxu0 %v1371
    %1512 = vmatpush1.bf16.msra.mxu0 %v1370
    %1513 = vmatprep.subr.bf16.mxu0 %v1363
    %1514 = vmatpush1.bf16.msra.mxu0 %v1362
    %1515 = vmatprep.subr.bf16.mxu0 %v1355
    %1516 = vmatpush1.bf16.msra.mxu0 %v1354
    %1517 = vmatprep.subr.bf16.mxu0 %v1347
    %1518 = vmatpush1.bf16.msra.mxu0 %v1346
    %1519 = vmatprep.subr.bf16.mxu0 %v1339
    %1520 = vmatpush1.bf16.msra.mxu0 %v1338
    %1521 = vmatprep.subr.bf16.mxu0 0
    %1522 = vmatpush2.bf16.msra.mxu0 0
    %1523 = vmatprep.subr.bf16.mxu0 0
    %1524 = vmatpush2.bf16.msra.mxu0 0
    %1525 = vmatprep.subr.bf16.mxu0 0
    %1526 = vmatpush2.bf16.msra.mxu0 0
    %1527 = vmatprep.subr.bf16.mxu0 0
    %1528 = vmatpush2.bf16.msra.mxu0 0
    %1529 = vmatprep.subr.bf16.mxu0 0
    %1530 = vmatpush2.bf16.msra.mxu0 0
    %1531 = vmatprep.subr.bf16.mxu0 0
    %1532 = vmatpush2.bf16.msra.mxu0 0
    %1533 = vmatprep.subr.bf16.mxu0 0
    %1534 = vmatpush2.bf16.msra.mxu0 0
    %1535 = vmatprep.subr.bf16.mxu0 0
    %1536 = vmatpush2.bf16.msra.mxu0 0
    %1537 = vmatprep.mubr.bf16.mxu0 0
    %1538 = vmatmul.mubr.bf16.gmra.mxu0 %v1037
    %v1539 = vpop.f32.mrf.mxu0
    %v1540 = vadd.f32 %v1115, %v1539
    %v1541 = vpop.f32.mrf.mxu0
    %v1542 = vadd.f32 %v1119, %v1541
    %v1543 = vpop.f32.mrf.mxu0
    %v1544 = vpop.f32.mrf.mxu0
    %1545 = vdwg.mxu0
    %1546 = vmatprep.subr.bf16.mxu0 %v1397
    %1547 = vmatpush1.bf16.msra.mxu0 %v1396
    %1548 = vmatprep.subr.bf16.mxu0 %v1389
    %1549 = vmatpush1.bf16.msra.mxu0 %v1388
    %1550 = vmatprep.subr.bf16.mxu0 %v1381
    %1551 = vmatpush1.bf16.msra.mxu0 %v1380
    %1552 = vmatprep.subr.bf16.mxu0 %v1373
    %1553 = vmatpush1.bf16.msra.mxu0 %v1372
    %1554 = vmatprep.subr.bf16.mxu0 %v1365
    %1555 = vmatpush1.bf16.msra.mxu0 %v1364
    %1556 = vmatprep.subr.bf16.mxu0 %v1357
    %1557 = vmatpush1.bf16.msra.mxu0 %v1356
    %1558 = vmatprep.subr.bf16.mxu0 %v1349
    %1559 = vmatpush1.bf16.msra.mxu0 %v1348
    %1560 = vmatprep.subr.bf16.mxu0 %v1341
    %1561 = vmatpush1.bf16.msra.mxu0 %v1340
    %1562 = vmatprep.subr.bf16.mxu0 0
    %1563 = vmatpush2.bf16.msra.mxu0 0
    %1564 = vmatprep.subr.bf16.mxu0 0
    %1565 = vmatpush2.bf16.msra.mxu0 0
    %1566 = vmatprep.subr.bf16.mxu0 0
    %1567 = vmatpush2.bf16.msra.mxu0 0
    %1568 = vmatprep.subr.bf16.mxu0 0
    %1569 = vmatpush2.bf16.msra.mxu0 0
    %1570 = vmatprep.subr.bf16.mxu0 0
    %1571 = vmatpush2.bf16.msra.mxu0 0
    %1572 = vmatprep.subr.bf16.mxu0 0
    %1573 = vmatpush2.bf16.msra.mxu0 0
    %1574 = vmatprep.subr.bf16.mxu0 0
    %1575 = vmatpush2.bf16.msra.mxu0 0
    %1576 = vmatprep.subr.bf16.mxu0 0
    %1577 = vmatpush2.bf16.msra.mxu0 0
    %1578 = vmatprep.mubr.bf16.mxu0 0
    %1579 = vmatmul.mubr.bf16.gmra.mxu0 %v1037
    %v1580 = vpop.f32.mrf.mxu0
    %v1581 = vadd.f32 %v1123, %v1580
    %v1582 = vpop.f32.mrf.mxu0
    %v1583 = vadd.f32 %v1127, %v1582
    %v1584 = vpop.f32.mrf.mxu0
    %v1585 = vpop.f32.mrf.mxu0
    %1586 = vdwg.mxu0
    %1587 = vmatprep.subr.bf16.mxu0 %v1399
    %1588 = vmatpush1.bf16.msra.mxu0 %v1398
    %1589 = vmatprep.subr.bf16.mxu0 %v1391
    %1590 = vmatpush1.bf16.msra.mxu0 %v1390
    %1591 = vmatprep.subr.bf16.mxu0 %v1383
    %1592 = vmatpush1.bf16.msra.mxu0 %v1382
    %1593 = vmatprep.subr.bf16.mxu0 %v1375
    %1594 = vmatpush1.bf16.msra.mxu0 %v1374
    %1595 = vmatprep.subr.bf16.mxu0 %v1367
    %1596 = vmatpush1.bf16.msra.mxu0 %v1366
    %1597 = vmatprep.subr.bf16.mxu0 %v1359
    %1598 = vmatpush1.bf16.msra.mxu0 %v1358
    %1599 = vmatprep.subr.bf16.mxu0 %v1351
    %1600 = vmatpush1.bf16.msra.mxu0 %v1350
    %1601 = vmatprep.subr.bf16.mxu0 %v1343
    %1602 = vmatpush1.bf16.msra.mxu0 %v1342
    %1603 = vmatprep.subr.bf16.mxu0 0
    %1604 = vmatpush2.bf16.msra.mxu0 0
    %1605 = vmatprep.subr.bf16.mxu0 0
    %1606 = vmatpush2.bf16.msra.mxu0 0
    %1607 = vmatprep.subr.bf16.mxu0 0
    %1608 = vmatpush2.bf16.msra.mxu0 0
    %1609 = vmatprep.subr.bf16.mxu0 0
    %1610 = vmatpush2.bf16.msra.mxu0 0
    %1611 = vmatprep.subr.bf16.mxu0 0
    %1612 = vmatpush2.bf16.msra.mxu0 0
    %1613 = vmatprep.subr.bf16.mxu0 0
    %1614 = vmatpush2.bf16.msra.mxu0 0
    %1615 = vmatprep.subr.bf16.mxu0 0
    %1616 = vmatpush2.bf16.msra.mxu0 0
    %1617 = vmatprep.subr.bf16.mxu0 0
    %1618 = vmatpush2.bf16.msra.mxu0 0
    %1619 = vmatprep.mubr.bf16.mxu0 0
    %1620 = vmatmul.mubr.bf16.gmra.mxu0 %v1037
    %v1621 = vpop.f32.mrf.mxu0
    %v1622 = vadd.f32 %v1131, %v1621
    %v1623 = vpop.f32.mrf.mxu0
    %v1624 = vadd.f32 %v1135, %v1623
    %v1625 = vpop.f32.mrf.mxu0
    %v1626 = vpop.f32.mrf.mxu0
    %1627 = vdwg.mxu0
    %v1628 = vxor.u32 %v1499, 2147483648
    %v1629 = vxor.u32 %v1501, 2147483648
    %v1630 = vxor.u32 %v1540, 2147483648
    %v1631 = vxor.u32 %v1542, 2147483648
    %v1632 = vxor.u32 %v1581, 2147483648
    %v1633 = vxor.u32 %v1583, 2147483648
    %v1634 = vxor.u32 %v1622, 2147483648
    %v1635 = vxor.u32 %v1624, 2147483648
    %v1636 = vmul.f32 %v1628, 1.442695
    %v1637 = vpow.pop %v1636
    %v1638 = vmul.f32 %v1629, 1.442695
    %v1639 = vpow.pop %v1638
    %v1640 = vmul.f32 %v1630, 1.442695
    %v1641 = vpow.pop %v1640
    %v1642 = vmul.f32 %v1631, 1.442695
    %v1643 = vpow.pop %v1642
    %v1644 = vmul.f32 %v1632, 1.442695
    %v1645 = vpow.pop %v1644
    %v1646 = vmul.f32 %v1633, 1.442695
    %v1647 = vpow.pop %v1646
    %v1648 = vmul.f32 %v1634, 1.442695
    %v1649 = vpow.pop %v1648
    %v1650 = vmul.f32 %v1635, 1.442695
    %v1651 = vpow.pop %v1650
    %v1652 = vadd.f32 %v1637, 1.0
    %v1653 = vadd.f32 %v1639, 1.0
    %v1654 = vadd.f32 %v1641, 1.0
    %v1655 = vadd.f32 %v1643, 1.0
    %v1656 = vadd.f32 %v1645, 1.0
    %v1657 = vadd.f32 %v1647, 1.0
    %v1658 = vadd.f32 %v1649, 1.0
    %v1659 = vadd.f32 %v1651, 1.0
    %v1660 = vrcp.pop %v1652
    %v1661 = vmul.f32 1.0, %v1660
    %v1662 = vrcp.pop %v1653
    %v1663 = vmul.f32 1.0, %v1662
    %v1664 = vrcp.pop %v1654
    %v1665 = vmul.f32 1.0, %v1664
    %v1666 = vrcp.pop %v1655
    %v1667 = vmul.f32 1.0, %v1666
    %v1668 = vrcp.pop %v1656
    %v1669 = vmul.f32 1.0, %v1668
    %v1670 = vrcp.pop %v1657
    %v1671 = vmul.f32 1.0, %v1670
    %v1672 = vrcp.pop %v1658
    %v1673 = vmul.f32 1.0, %v1672
    %v1674 = vrcp.pop %v1659
    %v1675 = vmul.f32 1.0, %v1674
    %1676 = vst [vmem:[#allocation11] sm:$0xff] %v1661
    %1677 = vst [vmem:[#allocation11 + $0x8] sm:$0xff] %v1663
    %1678 = vst [vmem:[#allocation11 + $0x10] sm:$0xff] %v1665
    %1679 = vst [vmem:[#allocation11 + $0x18] sm:$0xff] %v1667
    %1680 = vst [vmem:[#allocation11 + $0x20] sm:$0xff] %v1669
    %1681 = vst [vmem:[#allocation11 + $0x28] sm:$0xff] %v1671
    %1682 = vst [vmem:[#allocation11 + $0x30] sm:$0xff] %v1673
    %1683 = vst [vmem:[#allocation11 + $0x38] sm:$0xff] %v1675
    // Predicated region
    $region58: #{tpu_custom_call.1} parent=1 // pred_check
      _
    $region59: #{tpu_custom_call.1} parent=1 // pred_check_branch
      %1685 = sbr.rel (0) target = $region61
    $region60: #{tpu_custom_call.1} parent=1 // pred_region
      %s1687 = ssub.s32 1024, 1024
      %1688 = vsyncadd [#allocation4], %s1687
      %s1690 = sshll.u32 [#allocation11], 4
      %s1691 = int_to_ptr.vmem [resolvable:$true] %s1690
      %1693 = dma.vmem_to_hbm [thread:$0]  %s1691, 1024, %s9, [#allocation4]
    $region61: #{tpu_custom_call.1} parent=1 // pred_fallthru
      _
    // Predicated region
    $region62: #{tpu_custom_call.1} parent=1 // pred_check
      _
    $region63: #{tpu_custom_call.1} parent=1 // pred_check_branch
      %1695 = sbr.rel (0) target = $region65
    $region64: #{tpu_custom_call.1} parent=1 // pred_region
      %1696 = dma.done [#allocation4], 1024
    $region65: #{tpu_custom_call.1} parent=1 // pred_fallthru
      _
    %1697 = vsyncpa [#allocation3], 1
    %1698 = vsyncpa [#allocation6], 1
    %1699 = vsyncpa [#allocation9], 1
    %1700 = vsyncpa [#allocation4], 1

</llo_original>
